<compile_context>
chip_gen: v6e
topology: v6e:2x2x1
jax: 0.10.0
libtpu: 0.0.40
codegen_flags: <defaults>
</compile_context>

<pallas_src>
import jax
import jax.numpy as jnp
from jax.experimental import pallas as pl
from jax.experimental.pallas import tpu as pltpu

KSIZE = 2        # TestModel(size=2): kernel size, pool size, #channels all equal `size`
CHANNELS = KSIZE
BN_EPS = 1e-5


def testmodel_kernel(x_ref, w1_ref, b1_ref, w0_ref, b0_ref, gam_ref, bet_ref, o_ref):
    """Whole TestModel forward, fully resident in VMEM.

    x_ref:   (N, C, H, W) f32 in VMEM
    w*_ref:  flattened OIHW conv weights (Co*Ci*K*K,) f32 in SMEM (scalar reads)
    b*_ref:  conv biases (C,) f32 in SMEM
    gam_ref/bet_ref: BatchNorm gamma/beta for [bn1, bn2, norm10, norm20], flat (4*C,) SMEM
    o_ref:   (N, C) f32 in VMEM (wrapper reshapes to (N, C, 1, 1))
    """
    K = KSIZE
    C = CHANNELS

    # ---- hoist ALL SMEM scalar reads to the top (conv0 weights shared by two convs) ----
    def read_w(w_ref):
        return [[[[w_ref[((co * C + ci) * K + ki) * K + kj]
                   for kj in range(K)] for ki in range(K)]
                 for ci in range(C)] for co in range(C)]

    w1 = read_w(w1_ref)
    w0 = read_w(w0_ref)
    b1 = [b1_ref[c] for c in range(C)]
    b0 = [b0_ref[c] for c in range(C)]
    gam = [gam_ref[i] for i in range(4 * C)]
    bet = [bet_ref[i] for i in range(4 * C)]

    x = x_ref[...].astype(jnp.float32)
    # per-channel representation: list of C arrays, each (N, H, W)
    hs = [x[:, c] for c in range(C)]

    def conv2d(hs_in, w, b):
        # valid conv, stride 1, bias. Window slice hoisted out of the `co` loop.
        _, hi, wi = hs_in[0].shape
        ho, wo = hi - K + 1, wi - K + 1
        accs = [None] * C
        for ci in range(C):
            for ki in range(K):
                for kj in range(K):
                    win = hs_in[ci][:, ki:ki + ho, kj:kj + wo]   # sliced once, used for all co
                    for co in range(C):
                        t = w[co][ci][ki][kj] * win
                        accs[co] = t if accs[co] is None else accs[co] + t
        return [accs[co] + b[co] for co in range(C)]

    def batchnorm(hs_in, idx):
        # train-mode BatchNorm2d: per-channel batch stats over (N, H, W), biased variance,
        # one-pass formulation var = E[x^2] - E[x]^2.
        out = []
        for c in range(C):
            hc = hs_in[c]
            inv_cnt = 1.0 / float(hc.shape[0] * hc.shape[1] * hc.shape[2])
            s = jnp.sum(hc)
            s2 = jnp.sum(hc * hc)
            mean = s * inv_cnt
            var = s2 * inv_cnt - mean * mean
            scale = gam[idx * C + c] * jax.lax.rsqrt(var + BN_EPS)
            shift = bet[idx * C + c] - mean * scale
            out.append(hc * scale + shift)
        return out

    def relu(hs_in):
        return [jnp.maximum(h, 0.0) for h in hs_in]

    def pool2x2(hs_in, red, post_scale=None):
        # kernel=2, stride=2, floor mode (trailing remainder dropped), no padding.
        # One vectorized pair-reduce per direction, then gather even rows/cols with
        # contiguous width-1 slices (no strided slicing).
        out = []
        for h in hs_in:
            _, hi, wi = h.shape
            ho, wo = hi // K, wi // K
            pw = red(h[:, :, :wi - 1], h[:, :, 1:])                      # pairs along W
            g = jnp.concatenate([pw[:, :, 2 * j:2 * j + 1] for j in range(wo)], axis=2)
            ph = red(g[:, :hi - 1, :], g[:, 1:, :])                      # pairs along H
            r = jnp.concatenate([ph[:, 2 * i:2 * i + 1, :] for i in range(ho)], axis=1)
            if post_scale is not None:
                r = r * post_scale
            out.append(r)
        return out

    h = conv2d(hs, w1, b1)                 # conv1
    h = batchnorm(h, 0)                    # bn1
    h = relu(h)                            # ReLU()(x); F.relu(x) folded (idempotent)
    h = batchnorm(h, 1)                    # bn2
    # layer2 -> layer1
    h = conv2d(h, w0, b0)                  # conv01 (conv0)
    h = batchnorm(h, 2)                    # norm01 (norm10)
    h = relu(h)                            # relu01
    h = pool2x2(h, jnp.maximum)            # pool01
    # layer2 tail
    h = conv2d(h, w0, b0)                  # conv02 (conv0 again, shared weights)
    h = relu(h)                            # relu02
    h = batchnorm(h, 3)                    # norm02 (norm20)
    h = pool2x2(h, jnp.maximum)            # pool02
    h = pool2x2(h, jnp.add, post_scale=1.0 / (K * K))    # avgpool -> per-channel (N,1,1)

    # lane-dense 2-D output slab (N, C); wrapper reshapes to (N, C, 1, 1)
    cols = [h[c][:, :, 0] for c in range(C)]             # each (N, 1)
    o_ref[...] = jnp.concatenate(cols, axis=1).astype(o_ref.dtype)


def testmodel_forward(x, w1, b1, w0, b0, gammas, betas):
    n, c, _, _ = x.shape
    smem = pl.BlockSpec(memory_space=pltpu.MemorySpace.SMEM)
    vmem = pl.BlockSpec(memory_space=pltpu.MemorySpace.VMEM)
    out2d = pl.pallas_call(
        testmodel_kernel,
        out_shape=jax.ShapeDtypeStruct((n, c), jnp.float32),
        in_specs=[vmem, smem, smem, smem, smem, smem, smem],
        out_specs=vmem,
    )(x.astype(jnp.float32),
      w1.reshape(-1).astype(jnp.float32), b1.astype(jnp.float32),
      w0.reshape(-1).astype(jnp.float32), b0.astype(jnp.float32),
      gammas.reshape(-1).astype(jnp.float32), betas.reshape(-1).astype(jnp.float32))
    return out2d.reshape(n, c, 1, 1)


def reference_forward(x, w1, b1, w0, b0, gammas, betas):
    """Pure-JAX reference (lax conv / reduce_window) with identical semantics."""
    K = KSIZE

    def conv(h, w, b):
        y = jax.lax.conv_general_dilated(h, w, (1, 1), 'VALID',
                                         dimension_numbers=('NCHW', 'OIHW', 'NCHW'))
        return y + b[None, :, None, None]

    def bn(h, idx):
        m = h.mean(axis=(0, 2, 3), keepdims=True)
        v = ((h - m) ** 2).mean(axis=(0, 2, 3), keepdims=True)
        g = gammas[idx][None, :, None, None]
        be = betas[idx][None, :, None, None]
        return (h - m) / jnp.sqrt(v + BN_EPS) * g + be

    def maxpool(h):
        return jax.lax.reduce_window(h, -jnp.inf, jax.lax.max,
                                     (1, 1, K, K), (1, 1, K, K), 'VALID')

    def avgpool(h):
        s = jax.lax.reduce_window(h, 0.0, jax.lax.add,
                                  (1, 1, K, K), (1, 1, K, K), 'VALID')
        return s / (K * K)

    h = conv(x, w1, b1)
    h = bn(h, 0)
    h = jnp.maximum(h, 0.0)
    h = jnp.maximum(h, 0.0)
    h = bn(h, 1)
    h = conv(h, w0, b0)
    h = bn(h, 2)
    h = jnp.maximum(h, 0.0)
    h = maxpool(h)
    h = conv(h, w0, b0)
    h = jnp.maximum(h, 0.0)
    h = bn(h, 3)
    h = maxpool(h)
    return avgpool(h)


if __name__ == "__main__":
    N, C, H, W = 2, CHANNELS, 16, 16
    key = jax.random.PRNGKey(0)
    ks = jax.random.split(key, 7)

    # Deterministic synthetic parameters (shapes match TestModel(size=2)).
    w1 = 0.4 * jax.random.normal(ks[0], (C, C, KSIZE, KSIZE), jnp.float32)   # conv1.weight
    b1 = 0.1 * jax.random.normal(ks[1], (C,), jnp.float32)                   # conv1.bias
    w0 = 0.4 * jax.random.normal(ks[2], (C, C, KSIZE, KSIZE), jnp.float32)   # conv0.weight (shared)
    b0 = 0.1 * jax.random.normal(ks[3], (C,), jnp.float32)                   # conv0.bias
    gammas = 1.0 + 0.1 * jax.random.normal(ks[4], (4, C), jnp.float32)       # bn1,bn2,norm10,norm20 weight
    betas = 0.1 * jax.random.normal(ks[5], (4, C), jnp.float32)              # bn1,bn2,norm10,norm20 bias
    # TODO(synk): running_mean/running_var buffer updates are not modeled (they do not
    # affect the train-mode forward output).

    x = jax.random.normal(ks[6], (N, C, H, W), jnp.float32)

    out = testmodel_forward(x, w1, b1, w0, b0, gammas, betas)
    out = jax.block_until_ready(out)

    ref = reference_forward(x, w1, b1, w0, b0, gammas, betas)
    assert out.shape == (N, C, 1, 1), out.shape
    assert jnp.allclose(out, ref, atol=2e-4, rtol=2e-4), (out, ref)
    print("KERNEL_OK")
</pallas_src>

<mosaic_0001>
module attributes {stable_mosaic.version = 11 : i64} {
  func.func @testmodel_kernel(%arg0: memref<2x2x16x16xf32, #tpu.memory_space<vmem>>, %arg1: memref<16xf32, #tpu.memory_space<smem>>, %arg2: memref<2xf32, #tpu.memory_space<smem>>, %arg3: memref<16xf32, #tpu.memory_space<smem>>, %arg4: memref<2xf32, #tpu.memory_space<smem>>, %arg5: memref<8xf32, #tpu.memory_space<smem>>, %arg6: memref<8xf32, #tpu.memory_space<smem>>, %arg7: memref<2x2xf32, #tpu.memory_space<vmem>>) attributes {dimension_semantics = [], scalar_prefetch = 0 : i64, scratch_operands = 0 : i64, tpu.core_type = #tpu.core_type<tc>} {
    %c0 = arith.constant 0 : index
    %0 = memref.load %arg1[%c0] : memref<16xf32, #tpu.memory_space<smem>>
    %c1 = arith.constant 1 : index
    %1 = memref.load %arg1[%c1] : memref<16xf32, #tpu.memory_space<smem>>
    %c2 = arith.constant 2 : index
    %2 = memref.load %arg1[%c2] : memref<16xf32, #tpu.memory_space<smem>>
    %c3 = arith.constant 3 : index
    %3 = memref.load %arg1[%c3] : memref<16xf32, #tpu.memory_space<smem>>
    %c4 = arith.constant 4 : index
    %4 = memref.load %arg1[%c4] : memref<16xf32, #tpu.memory_space<smem>>
    %c5 = arith.constant 5 : index
    %5 = memref.load %arg1[%c5] : memref<16xf32, #tpu.memory_space<smem>>
    %c6 = arith.constant 6 : index
    %6 = memref.load %arg1[%c6] : memref<16xf32, #tpu.memory_space<smem>>
    %c7 = arith.constant 7 : index
    %7 = memref.load %arg1[%c7] : memref<16xf32, #tpu.memory_space<smem>>
    %c8 = arith.constant 8 : index
    %8 = memref.load %arg1[%c8] : memref<16xf32, #tpu.memory_space<smem>>
    %c9 = arith.constant 9 : index
    %9 = memref.load %arg1[%c9] : memref<16xf32, #tpu.memory_space<smem>>
    %c10 = arith.constant 10 : index
    %10 = memref.load %arg1[%c10] : memref<16xf32, #tpu.memory_space<smem>>
    %c11 = arith.constant 11 : index
    %11 = memref.load %arg1[%c11] : memref<16xf32, #tpu.memory_space<smem>>
    %c12 = arith.constant 12 : index
    %12 = memref.load %arg1[%c12] : memref<16xf32, #tpu.memory_space<smem>>
    %c13 = arith.constant 13 : index
    %13 = memref.load %arg1[%c13] : memref<16xf32, #tpu.memory_space<smem>>
    %c14 = arith.constant 14 : index
    %14 = memref.load %arg1[%c14] : memref<16xf32, #tpu.memory_space<smem>>
    %c15 = arith.constant 15 : index
    %15 = memref.load %arg1[%c15] : memref<16xf32, #tpu.memory_space<smem>>
    %c0_0 = arith.constant 0 : index
    %16 = memref.load %arg3[%c0_0] : memref<16xf32, #tpu.memory_space<smem>>
    %c1_1 = arith.constant 1 : index
    %17 = memref.load %arg3[%c1_1] : memref<16xf32, #tpu.memory_space<smem>>
    %c2_2 = arith.constant 2 : index
    %18 = memref.load %arg3[%c2_2] : memref<16xf32, #tpu.memory_space<smem>>
    %c3_3 = arith.constant 3 : index
    %19 = memref.load %arg3[%c3_3] : memref<16xf32, #tpu.memory_space<smem>>
    %c4_4 = arith.constant 4 : index
    %20 = memref.load %arg3[%c4_4] : memref<16xf32, #tpu.memory_space<smem>>
    %c5_5 = arith.constant 5 : index
    %21 = memref.load %arg3[%c5_5] : memref<16xf32, #tpu.memory_space<smem>>
    %c6_6 = arith.constant 6 : index
    %22 = memref.load %arg3[%c6_6] : memref<16xf32, #tpu.memory_space<smem>>
    %c7_7 = arith.constant 7 : index
    %23 = memref.load %arg3[%c7_7] : memref<16xf32, #tpu.memory_space<smem>>
    %c8_8 = arith.constant 8 : index
    %24 = memref.load %arg3[%c8_8] : memref<16xf32, #tpu.memory_space<smem>>
    %c9_9 = arith.constant 9 : index
    %25 = memref.load %arg3[%c9_9] : memref<16xf32, #tpu.memory_space<smem>>
    %c10_10 = arith.constant 10 : index
    %26 = memref.load %arg3[%c10_10] : memref<16xf32, #tpu.memory_space<smem>>
    %c11_11 = arith.constant 11 : index
    %27 = memref.load %arg3[%c11_11] : memref<16xf32, #tpu.memory_space<smem>>
    %c12_12 = arith.constant 12 : index
    %28 = memref.load %arg3[%c12_12] : memref<16xf32, #tpu.memory_space<smem>>
    %c13_13 = arith.constant 13 : index
    %29 = memref.load %arg3[%c13_13] : memref<16xf32, #tpu.memory_space<smem>>
    %c14_14 = arith.constant 14 : index
    %30 = memref.load %arg3[%c14_14] : memref<16xf32, #tpu.memory_space<smem>>
    %c15_15 = arith.constant 15 : index
    %31 = memref.load %arg3[%c15_15] : memref<16xf32, #tpu.memory_space<smem>>
    %c0_16 = arith.constant 0 : index
    %32 = memref.load %arg2[%c0_16] : memref<2xf32, #tpu.memory_space<smem>>
    %c1_17 = arith.constant 1 : index
    %33 = memref.load %arg2[%c1_17] : memref<2xf32, #tpu.memory_space<smem>>
    %c0_18 = arith.constant 0 : index
    %34 = memref.load %arg4[%c0_18] : memref<2xf32, #tpu.memory_space<smem>>
    %c1_19 = arith.constant 1 : index
    %35 = memref.load %arg4[%c1_19] : memref<2xf32, #tpu.memory_space<smem>>
    %c0_20 = arith.constant 0 : index
    %36 = memref.load %arg5[%c0_20] : memref<8xf32, #tpu.memory_space<smem>>
    %c1_21 = arith.constant 1 : index
    %37 = memref.load %arg5[%c1_21] : memref<8xf32, #tpu.memory_space<smem>>
    %c2_22 = arith.constant 2 : index
    %38 = memref.load %arg5[%c2_22] : memref<8xf32, #tpu.memory_space<smem>>
    %c3_23 = arith.constant 3 : index
    %39 = memref.load %arg5[%c3_23] : memref<8xf32, #tpu.memory_space<smem>>
    %c4_24 = arith.constant 4 : index
    %40 = memref.load %arg5[%c4_24] : memref<8xf32, #tpu.memory_space<smem>>
    %c5_25 = arith.constant 5 : index
    %41 = memref.load %arg5[%c5_25] : memref<8xf32, #tpu.memory_space<smem>>
    %c6_26 = arith.constant 6 : index
    %42 = memref.load %arg5[%c6_26] : memref<8xf32, #tpu.memory_space<smem>>
    %c7_27 = arith.constant 7 : index
    %43 = memref.load %arg5[%c7_27] : memref<8xf32, #tpu.memory_space<smem>>
    %c0_28 = arith.constant 0 : index
    %44 = memref.load %arg6[%c0_28] : memref<8xf32, #tpu.memory_space<smem>>
    %c1_29 = arith.constant 1 : index
    %45 = memref.load %arg6[%c1_29] : memref<8xf32, #tpu.memory_space<smem>>
    %c2_30 = arith.constant 2 : index
    %46 = memref.load %arg6[%c2_30] : memref<8xf32, #tpu.memory_space<smem>>
    %c3_31 = arith.constant 3 : index
    %47 = memref.load %arg6[%c3_31] : memref<8xf32, #tpu.memory_space<smem>>
    %c4_32 = arith.constant 4 : index
    %48 = memref.load %arg6[%c4_32] : memref<8xf32, #tpu.memory_space<smem>>
    %c5_33 = arith.constant 5 : index
    %49 = memref.load %arg6[%c5_33] : memref<8xf32, #tpu.memory_space<smem>>
    %c6_34 = arith.constant 6 : index
    %50 = memref.load %arg6[%c6_34] : memref<8xf32, #tpu.memory_space<smem>>
    %c7_35 = arith.constant 7 : index
    %51 = memref.load %arg6[%c7_35] : memref<8xf32, #tpu.memory_space<smem>>
    %c0_36 = arith.constant 0 : index
    %c0_37 = arith.constant 0 : index
    %c0_38 = arith.constant 0 : index
    %c0_39 = arith.constant 0 : index
    %52 = vector.load %arg0[%c0_36, %c0_37, %c0_38, %c0_39] : memref<2x2x16x16xf32, #tpu.memory_space<vmem>>, vector<2x2x16x16xf32>
    %53 = vector.extract_strided_slice %52 {offsets = [0, 0, 0, 0], sizes = [2, 1, 16, 16], strides = [1, 1, 1, 1]} : vector<2x2x16x16xf32> to vector<2x1x16x16xf32>
    %54 = vector.shape_cast %53 : vector<2x1x16x16xf32> to vector<2x16x16xf32>
    %55 = vector.extract_strided_slice %52 {offsets = [0, 1, 0, 0], sizes = [2, 1, 16, 16], strides = [1, 1, 1, 1]} : vector<2x2x16x16xf32> to vector<2x1x16x16xf32>
    %56 = vector.shape_cast %55 : vector<2x1x16x16xf32> to vector<2x16x16xf32>
    %57 = vector.extract_strided_slice %54 {offsets = [0, 0, 0], sizes = [2, 15, 15], strides = [1, 1, 1]} : vector<2x16x16xf32> to vector<2x15x15xf32>
    %58 = vector.broadcast %0 : f32 to vector<2x15x15xf32>
    %59 = arith.mulf %58, %57 : vector<2x15x15xf32>
    %60 = vector.broadcast %8 : f32 to vector<2x15x15xf32>
    %61 = arith.mulf %60, %57 : vector<2x15x15xf32>
    %62 = vector.extract_strided_slice %54 {offsets = [0, 0, 1], sizes = [2, 15, 15], strides = [1, 1, 1]} : vector<2x16x16xf32> to vector<2x15x15xf32>
    %63 = vector.broadcast %1 : f32 to vector<2x15x15xf32>
    %64 = arith.mulf %63, %62 : vector<2x15x15xf32>
    %65 = arith.addf %59, %64 : vector<2x15x15xf32>
    %66 = vector.broadcast %9 : f32 to vector<2x15x15xf32>
    %67 = arith.mulf %66, %62 : vector<2x15x15xf32>
    %68 = arith.addf %61, %67 : vector<2x15x15xf32>
    %69 = vector.extract_strided_slice %54 {offsets = [0, 1, 0], sizes = [2, 15, 15], strides = [1, 1, 1]} : vector<2x16x16xf32> to vector<2x15x15xf32>
    %70 = vector.broadcast %2 : f32 to vector<2x15x15xf32>
    %71 = arith.mulf %70, %69 : vector<2x15x15xf32>
    %72 = arith.addf %65, %71 : vector<2x15x15xf32>
    %73 = vector.broadcast %10 : f32 to vector<2x15x15xf32>
    %74 = arith.mulf %73, %69 : vector<2x15x15xf32>
    %75 = arith.addf %68, %74 : vector<2x15x15xf32>
    %76 = vector.extract_strided_slice %54 {offsets = [0, 1, 1], sizes = [2, 15, 15], strides = [1, 1, 1]} : vector<2x16x16xf32> to vector<2x15x15xf32>
    %77 = vector.broadcast %3 : f32 to vector<2x15x15xf32>
    %78 = arith.mulf %77, %76 : vector<2x15x15xf32>
    %79 = arith.addf %72, %78 : vector<2x15x15xf32>
    %80 = vector.broadcast %11 : f32 to vector<2x15x15xf32>
    %81 = arith.mulf %80, %76 : vector<2x15x15xf32>
    %82 = arith.addf %75, %81 : vector<2x15x15xf32>
    %83 = vector.extract_strided_slice %56 {offsets = [0, 0, 0], sizes = [2, 15, 15], strides = [1, 1, 1]} : vector<2x16x16xf32> to vector<2x15x15xf32>
    %84 = vector.broadcast %4 : f32 to vector<2x15x15xf32>
    %85 = arith.mulf %84, %83 : vector<2x15x15xf32>
    %86 = arith.addf %79, %85 : vector<2x15x15xf32>
    %87 = vector.broadcast %12 : f32 to vector<2x15x15xf32>
    %88 = arith.mulf %87, %83 : vector<2x15x15xf32>
    %89 = arith.addf %82, %88 : vector<2x15x15xf32>
    %90 = vector.extract_strided_slice %56 {offsets = [0, 0, 1], sizes = [2, 15, 15], strides = [1, 1, 1]} : vector<2x16x16xf32> to vector<2x15x15xf32>
    %91 = vector.broadcast %5 : f32 to vector<2x15x15xf32>
    %92 = arith.mulf %91, %90 : vector<2x15x15xf32>
    %93 = arith.addf %86, %92 : vector<2x15x15xf32>
    %94 = vector.broadcast %13 : f32 to vector<2x15x15xf32>
    %95 = arith.mulf %94, %90 : vector<2x15x15xf32>
    %96 = arith.addf %89, %95 : vector<2x15x15xf32>
    %97 = vector.extract_strided_slice %56 {offsets = [0, 1, 0], sizes = [2, 15, 15], strides = [1, 1, 1]} : vector<2x16x16xf32> to vector<2x15x15xf32>
    %98 = vector.broadcast %6 : f32 to vector<2x15x15xf32>
    %99 = arith.mulf %98, %97 : vector<2x15x15xf32>
    %100 = arith.addf %93, %99 : vector<2x15x15xf32>
    %101 = vector.broadcast %14 : f32 to vector<2x15x15xf32>
    %102 = arith.mulf %101, %97 : vector<2x15x15xf32>
    %103 = arith.addf %96, %102 : vector<2x15x15xf32>
    %104 = vector.extract_strided_slice %56 {offsets = [0, 1, 1], sizes = [2, 15, 15], strides = [1, 1, 1]} : vector<2x16x16xf32> to vector<2x15x15xf32>
    %105 = vector.broadcast %7 : f32 to vector<2x15x15xf32>
    %106 = arith.mulf %105, %104 : vector<2x15x15xf32>
    %107 = arith.addf %100, %106 : vector<2x15x15xf32>
    %108 = vector.broadcast %15 : f32 to vector<2x15x15xf32>
    %109 = arith.mulf %108, %104 : vector<2x15x15xf32>
    %110 = arith.addf %103, %109 : vector<2x15x15xf32>
    %111 = vector.broadcast %32 : f32 to vector<2x15x15xf32>
    %112 = arith.addf %107, %111 : vector<2x15x15xf32>
    %113 = vector.broadcast %33 : f32 to vector<2x15x15xf32>
    %114 = arith.addf %110, %113 : vector<2x15x15xf32>
    %115 = vector.shape_cast %112 : vector<2x15x15xf32> to vector<1x2x15x15xf32>
    %cst = arith.constant dense<0.000000e+00> : vector<1xf32>
    %116 = vector.multi_reduction <add>, %115, %cst [1, 2, 3] : vector<1x2x15x15xf32> to vector<1xf32>
    %117 = vector.shape_cast %116 : vector<1xf32> to vector<1x1x1x1xf32>
    %118 = vector.extract %117[0, 0, 0, 0] : f32 from vector<1x1x1x1xf32>
    %119 = arith.mulf %112, %112 : vector<2x15x15xf32>
    %120 = vector.shape_cast %119 : vector<2x15x15xf32> to vector<1x2x15x15xf32>
    %cst_40 = arith.constant dense<0.000000e+00> : vector<1xf32>
    %121 = vector.multi_reduction <add>, %120, %cst_40 [1, 2, 3] : vector<1x2x15x15xf32> to vector<1xf32>
    %122 = vector.shape_cast %121 : vector<1xf32> to vector<1x1x1x1xf32>
    %123 = vector.extract %122[0, 0, 0, 0] : f32 from vector<1x1x1x1xf32>
    %cst_41 = arith.constant 0.00222222228 : f32
    %124 = arith.mulf %118, %cst_41 : f32
    %cst_42 = arith.constant 0.00222222228 : f32
    %125 = arith.mulf %123, %cst_42 : f32
    %126 = arith.mulf %124, %124 : f32
    %127 = arith.subf %125, %126 : f32
    %cst_43 = arith.constant 9.99999974E-6 : f32
    %128 = arith.addf %127, %cst_43 : f32
    %129 = math.rsqrt %128 : f32
    %130 = arith.mulf %36, %129 : f32
    %131 = arith.mulf %124, %130 : f32
    %132 = arith.subf %44, %131 : f32
    %133 = vector.broadcast %130 : f32 to vector<2x15x15xf32>
    %134 = arith.mulf %112, %133 : vector<2x15x15xf32>
    %135 = vector.broadcast %132 : f32 to vector<2x15x15xf32>
    %136 = arith.addf %134, %135 : vector<2x15x15xf32>
    %137 = vector.shape_cast %114 : vector<2x15x15xf32> to vector<1x2x15x15xf32>
    %cst_44 = arith.constant dense<0.000000e+00> : vector<1xf32>
    %138 = vector.multi_reduction <add>, %137, %cst_44 [1, 2, 3] : vector<1x2x15x15xf32> to vector<1xf32>
    %139 = vector.shape_cast %138 : vector<1xf32> to vector<1x1x1x1xf32>
    %140 = vector.extract %139[0, 0, 0, 0] : f32 from vector<1x1x1x1xf32>
    %141 = arith.mulf %114, %114 : vector<2x15x15xf32>
    %142 = vector.shape_cast %141 : vector<2x15x15xf32> to vector<1x2x15x15xf32>
    %cst_45 = arith.constant dense<0.000000e+00> : vector<1xf32>
    %143 = vector.multi_reduction <add>, %142, %cst_45 [1, 2, 3] : vector<1x2x15x15xf32> to vector<1xf32>
    %144 = vector.shape_cast %143 : vector<1xf32> to vector<1x1x1x1xf32>
    %145 = vector.extract %144[0, 0, 0, 0] : f32 from vector<1x1x1x1xf32>
    %cst_46 = arith.constant 0.00222222228 : f32
    %146 = arith.mulf %140, %cst_46 : f32
    %cst_47 = arith.constant 0.00222222228 : f32
    %147 = arith.mulf %145, %cst_47 : f32
    %148 = arith.mulf %146, %146 : f32
    %149 = arith.subf %147, %148 : f32
    %cst_48 = arith.constant 9.99999974E-6 : f32
    %150 = arith.addf %149, %cst_48 : f32
    %151 = math.rsqrt %150 : f32
    %152 = arith.mulf %37, %151 : f32
    %153 = arith.mulf %146, %152 : f32
    %154 = arith.subf %45, %153 : f32
    %155 = vector.broadcast %152 : f32 to vector<2x15x15xf32>
    %156 = arith.mulf %114, %155 : vector<2x15x15xf32>
    %157 = vector.broadcast %154 : f32 to vector<2x15x15xf32>
    %158 = arith.addf %156, %157 : vector<2x15x15xf32>
    %cst_49 = arith.constant 0.000000e+00 : f32
    %159 = vector.broadcast %cst_49 : f32 to vector<2x15x15xf32>
    %160 = arith.maximumf %136, %159 : vector<2x15x15xf32>
    %cst_50 = arith.constant 0.000000e+00 : f32
    %161 = vector.broadcast %cst_50 : f32 to vector<2x15x15xf32>
    %162 = arith.maximumf %158, %161 : vector<2x15x15xf32>
    %163 = vector.shape_cast %160 : vector<2x15x15xf32> to vector<1x2x15x15xf32>
    %cst_51 = arith.constant dense<0.000000e+00> : vector<1xf32>
    %164 = vector.multi_reduction <add>, %163, %cst_51 [1, 2, 3] : vector<1x2x15x15xf32> to vector<1xf32>
    %165 = vector.shape_cast %164 : vector<1xf32> to vector<1x1x1x1xf32>
    %166 = vector.extract %165[0, 0, 0, 0] : f32 from vector<1x1x1x1xf32>
    %167 = arith.mulf %160, %160 : vector<2x15x15xf32>
    %168 = vector.shape_cast %167 : vector<2x15x15xf32> to vector<1x2x15x15xf32>
    %cst_52 = arith.constant dense<0.000000e+00> : vector<1xf32>
    %169 = vector.multi_reduction <add>, %168, %cst_52 [1, 2, 3] : vector<1x2x15x15xf32> to vector<1xf32>
    %170 = vector.shape_cast %169 : vector<1xf32> to vector<1x1x1x1xf32>
    %171 = vector.extract %170[0, 0, 0, 0] : f32 from vector<1x1x1x1xf32>
    %cst_53 = arith.constant 0.00222222228 : f32
    %172 = arith.mulf %166, %cst_53 : f32
    %cst_54 = arith.constant 0.00222222228 : f32
    %173 = arith.mulf %171, %cst_54 : f32
    %174 = arith.mulf %172, %172 : f32
    %175 = arith.subf %173, %174 : f32
    %cst_55 = arith.constant 9.99999974E-6 : f32
    %176 = arith.addf %175, %cst_55 : f32
    %177 = math.rsqrt %176 : f32
    %178 = arith.mulf %38, %177 : f32
    %179 = arith.mulf %172, %178 : f32
    %180 = arith.subf %46, %179 : f32
    %181 = vector.broadcast %178 : f32 to vector<2x15x15xf32>
    %182 = arith.mulf %160, %181 : vector<2x15x15xf32>
    %183 = vector.broadcast %180 : f32 to vector<2x15x15xf32>
    %184 = arith.addf %182, %183 : vector<2x15x15xf32>
    %185 = vector.shape_cast %162 : vector<2x15x15xf32> to vector<1x2x15x15xf32>
    %cst_56 = arith.constant dense<0.000000e+00> : vector<1xf32>
    %186 = vector.multi_reduction <add>, %185, %cst_56 [1, 2, 3] : vector<1x2x15x15xf32> to vector<1xf32>
    %187 = vector.shape_cast %186 : vector<1xf32> to vector<1x1x1x1xf32>
    %188 = vector.extract %187[0, 0, 0, 0] : f32 from vector<1x1x1x1xf32>
    %189 = arith.mulf %162, %162 : vector<2x15x15xf32>
    %190 = vector.shape_cast %189 : vector<2x15x15xf32> to vector<1x2x15x15xf32>
    %cst_57 = arith.constant dense<0.000000e+00> : vector<1xf32>
    %191 = vector.multi_reduction <add>, %190, %cst_57 [1, 2, 3] : vector<1x2x15x15xf32> to vector<1xf32>
    %192 = vector.shape_cast %191 : vector<1xf32> to vector<1x1x1x1xf32>
    %193 = vector.extract %192[0, 0, 0, 0] : f32 from vector<1x1x1x1xf32>
    %cst_58 = arith.constant 0.00222222228 : f32
    %194 = arith.mulf %188, %cst_58 : f32
    %cst_59 = arith.constant 0.00222222228 : f32
    %195 = arith.mulf %193, %cst_59 : f32
    %196 = arith.mulf %194, %194 : f32
    %197 = arith.subf %195, %196 : f32
    %cst_60 = arith.constant 9.99999974E-6 : f32
    %198 = arith.addf %197, %cst_60 : f32
    %199 = math.rsqrt %198 : f32
    %200 = arith.mulf %39, %199 : f32
    %201 = arith.mulf %194, %200 : f32
    %202 = arith.subf %47, %201 : f32
    %203 = vector.broadcast %200 : f32 to vector<2x15x15xf32>
    %204 = arith.mulf %162, %203 : vector<2x15x15xf32>
    %205 = vector.broadcast %202 : f32 to vector<2x15x15xf32>
    %206 = arith.addf %204, %205 : vector<2x15x15xf32>
    %207 = vector.extract_strided_slice %184 {offsets = [0, 0, 0], sizes = [2, 14, 14], strides = [1, 1, 1]} : vector<2x15x15xf32> to vector<2x14x14xf32>
    %208 = vector.broadcast %16 : f32 to vector<2x14x14xf32>
    %209 = arith.mulf %208, %207 : vector<2x14x14xf32>
    %210 = vector.broadcast %24 : f32 to vector<2x14x14xf32>
    %211 = arith.mulf %210, %207 : vector<2x14x14xf32>
    %212 = vector.extract_strided_slice %184 {offsets = [0, 0, 1], sizes = [2, 14, 14], strides = [1, 1, 1]} : vector<2x15x15xf32> to vector<2x14x14xf32>
    %213 = vector.broadcast %17 : f32 to vector<2x14x14xf32>
    %214 = arith.mulf %213, %212 : vector<2x14x14xf32>
    %215 = arith.addf %209, %214 : vector<2x14x14xf32>
    %216 = vector.broadcast %25 : f32 to vector<2x14x14xf32>
    %217 = arith.mulf %216, %212 : vector<2x14x14xf32>
    %218 = arith.addf %211, %217 : vector<2x14x14xf32>
    %219 = vector.extract_strided_slice %184 {offsets = [0, 1, 0], sizes = [2, 14, 14], strides = [1, 1, 1]} : vector<2x15x15xf32> to vector<2x14x14xf32>
    %220 = vector.broadcast %18 : f32 to vector<2x14x14xf32>
    %221 = arith.mulf %220, %219 : vector<2x14x14xf32>
    %222 = arith.addf %215, %221 : vector<2x14x14xf32>
    %223 = vector.broadcast %26 : f32 to vector<2x14x14xf32>
    %224 = arith.mulf %223, %219 : vector<2x14x14xf32>
    %225 = arith.addf %218, %224 : vector<2x14x14xf32>
    %226 = vector.extract_strided_slice %184 {offsets = [0, 1, 1], sizes = [2, 14, 14], strides = [1, 1, 1]} : vector<2x15x15xf32> to vector<2x14x14xf32>
    %227 = vector.broadcast %19 : f32 to vector<2x14x14xf32>
    %228 = arith.mulf %227, %226 : vector<2x14x14xf32>
    %229 = arith.addf %222, %228 : vector<2x14x14xf32>
    %230 = vector.broadcast %27 : f32 to vector<2x14x14xf32>
    %231 = arith.mulf %230, %226 : vector<2x14x14xf32>
    %232 = arith.addf %225, %231 : vector<2x14x14xf32>
    %233 = vector.extract_strided_slice %206 {offsets = [0, 0, 0], sizes = [2, 14, 14], strides = [1, 1, 1]} : vector<2x15x15xf32> to vector<2x14x14xf32>
    %234 = vector.broadcast %20 : f32 to vector<2x14x14xf32>
    %235 = arith.mulf %234, %233 : vector<2x14x14xf32>
    %236 = arith.addf %229, %235 : vector<2x14x14xf32>
    %237 = vector.broadcast %28 : f32 to vector<2x14x14xf32>
    %238 = arith.mulf %237, %233 : vector<2x14x14xf32>
    %239 = arith.addf %232, %238 : vector<2x14x14xf32>
    %240 = vector.extract_strided_slice %206 {offsets = [0, 0, 1], sizes = [2, 14, 14], strides = [1, 1, 1]} : vector<2x15x15xf32> to vector<2x14x14xf32>
    %241 = vector.broadcast %21 : f32 to vector<2x14x14xf32>
    %242 = arith.mulf %241, %240 : vector<2x14x14xf32>
    %243 = arith.addf %236, %242 : vector<2x14x14xf32>
    %244 = vector.broadcast %29 : f32 to vector<2x14x14xf32>
    %245 = arith.mulf %244, %240 : vector<2x14x14xf32>
    %246 = arith.addf %239, %245 : vector<2x14x14xf32>
    %247 = vector.extract_strided_slice %206 {offsets = [0, 1, 0], sizes = [2, 14, 14], strides = [1, 1, 1]} : vector<2x15x15xf32> to vector<2x14x14xf32>
    %248 = vector.broadcast %22 : f32 to vector<2x14x14xf32>
    %249 = arith.mulf %248, %247 : vector<2x14x14xf32>
    %250 = arith.addf %243, %249 : vector<2x14x14xf32>
    %251 = vector.broadcast %30 : f32 to vector<2x14x14xf32>
    %252 = arith.mulf %251, %247 : vector<2x14x14xf32>
    %253 = arith.addf %246, %252 : vector<2x14x14xf32>
    %254 = vector.extract_strided_slice %206 {offsets = [0, 1, 1], sizes = [2, 14, 14], strides = [1, 1, 1]} : vector<2x15x15xf32> to vector<2x14x14xf32>
    %255 = vector.broadcast %23 : f32 to vector<2x14x14xf32>
    %256 = arith.mulf %255, %254 : vector<2x14x14xf32>
    %257 = arith.addf %250, %256 : vector<2x14x14xf32>
    %258 = vector.broadcast %31 : f32 to vector<2x14x14xf32>
    %259 = arith.mulf %258, %254 : vector<2x14x14xf32>
    %260 = arith.addf %253, %259 : vector<2x14x14xf32>
    %261 = vector.broadcast %34 : f32 to vector<2x14x14xf32>
    %262 = arith.addf %257, %261 : vector<2x14x14xf32>
    %263 = vector.broadcast %35 : f32 to vector<2x14x14xf32>
    %264 = arith.addf %260, %263 : vector<2x14x14xf32>
    %265 = vector.shape_cast %262 : vector<2x14x14xf32> to vector<1x2x14x14xf32>
    %cst_61 = arith.constant dense<0.000000e+00> : vector<1xf32>
    %266 = vector.multi_reduction <add>, %265, %cst_61 [1, 2, 3] : vector<1x2x14x14xf32> to vector<1xf32>
    %267 = vector.shape_cast %266 : vector<1xf32> to vector<1x1x1x1xf32>
    %268 = vector.extract %267[0, 0, 0, 0] : f32 from vector<1x1x1x1xf32>
    %269 = arith.mulf %262, %262 : vector<2x14x14xf32>
    %270 = vector.shape_cast %269 : vector<2x14x14xf32> to vector<1x2x14x14xf32>
    %cst_62 = arith.constant dense<0.000000e+00> : vector<1xf32>
    %271 = vector.multi_reduction <add>, %270, %cst_62 [1, 2, 3] : vector<1x2x14x14xf32> to vector<1xf32>
    %272 = vector.shape_cast %271 : vector<1xf32> to vector<1x1x1x1xf32>
    %273 = vector.extract %272[0, 0, 0, 0] : f32 from vector<1x1x1x1xf32>
    %cst_63 = arith.constant 0.00255102036 : f32
    %274 = arith.mulf %268, %cst_63 : f32
    %cst_64 = arith.constant 0.00255102036 : f32
    %275 = arith.mulf %273, %cst_64 : f32
    %276 = arith.mulf %274, %274 : f32
    %277 = arith.subf %275, %276 : f32
    %cst_65 = arith.constant 9.99999974E-6 : f32
    %278 = arith.addf %277, %cst_65 : f32
    %279 = math.rsqrt %278 : f32
    %280 = arith.mulf %40, %279 : f32
    %281 = arith.mulf %274, %280 : f32
    %282 = arith.subf %48, %281 : f32
    %283 = vector.broadcast %280 : f32 to vector<2x14x14xf32>
    %284 = arith.mulf %262, %283 : vector<2x14x14xf32>
    %285 = vector.broadcast %282 : f32 to vector<2x14x14xf32>
    %286 = arith.addf %284, %285 : vector<2x14x14xf32>
    %287 = vector.shape_cast %264 : vector<2x14x14xf32> to vector<1x2x14x14xf32>
    %cst_66 = arith.constant dense<0.000000e+00> : vector<1xf32>
    %288 = vector.multi_reduction <add>, %287, %cst_66 [1, 2, 3] : vector<1x2x14x14xf32> to vector<1xf32>
    %289 = vector.shape_cast %288 : vector<1xf32> to vector<1x1x1x1xf32>
    %290 = vector.extract %289[0, 0, 0, 0] : f32 from vector<1x1x1x1xf32>
    %291 = arith.mulf %264, %264 : vector<2x14x14xf32>
    %292 = vector.shape_cast %291 : vector<2x14x14xf32> to vector<1x2x14x14xf32>
    %cst_67 = arith.constant dense<0.000000e+00> : vector<1xf32>
    %293 = vector.multi_reduction <add>, %292, %cst_67 [1, 2, 3] : vector<1x2x14x14xf32> to vector<1xf32>
    %294 = vector.shape_cast %293 : vector<1xf32> to vector<1x1x1x1xf32>
    %295 = vector.extract %294[0, 0, 0, 0] : f32 from vector<1x1x1x1xf32>
    %cst_68 = arith.constant 0.00255102036 : f32
    %296 = arith.mulf %290, %cst_68 : f32
    %cst_69 = arith.constant 0.00255102036 : f32
    %297 = arith.mulf %295, %cst_69 : f32
    %298 = arith.mulf %296, %296 : f32
    %299 = arith.subf %297, %298 : f32
    %cst_70 = arith.constant 9.99999974E-6 : f32
    %300 = arith.addf %299, %cst_70 : f32
    %301 = math.rsqrt %300 : f32
    %302 = arith.mulf %41, %301 : f32
    %303 = arith.mulf %296, %302 : f32
    %304 = arith.subf %49, %303 : f32
    %305 = vector.broadcast %302 : f32 to vector<2x14x14xf32>
    %306 = arith.mulf %264, %305 : vector<2x14x14xf32>
    %307 = vector.broadcast %304 : f32 to vector<2x14x14xf32>
    %308 = arith.addf %306, %307 : vector<2x14x14xf32>
    %cst_71 = arith.constant 0.000000e+00 : f32
    %309 = vector.broadcast %cst_71 : f32 to vector<2x14x14xf32>
    %310 = arith.maximumf %286, %309 : vector<2x14x14xf32>
    %cst_72 = arith.constant 0.000000e+00 : f32
    %311 = vector.broadcast %cst_72 : f32 to vector<2x14x14xf32>
    %312 = arith.maximumf %308, %311 : vector<2x14x14xf32>
    %313 = vector.extract_strided_slice %310 {offsets = [0, 0, 0], sizes = [2, 14, 13], strides = [1, 1, 1]} : vector<2x14x14xf32> to vector<2x14x13xf32>
    %314 = vector.extract_strided_slice %310 {offsets = [0, 0, 1], sizes = [2, 14, 13], strides = [1, 1, 1]} : vector<2x14x14xf32> to vector<2x14x13xf32>
    %315 = arith.maximumf %313, %314 : vector<2x14x13xf32>
    %316 = vector.extract_strided_slice %315 {offsets = [0, 0, 0], sizes = [2, 14, 1], strides = [1, 1, 1]} : vector<2x14x13xf32> to vector<2x14x1xf32>
    %317 = vector.extract_strided_slice %315 {offsets = [0, 0, 2], sizes = [2, 14, 1], strides = [1, 1, 1]} : vector<2x14x13xf32> to vector<2x14x1xf32>
    %318 = vector.extract_strided_slice %315 {offsets = [0, 0, 4], sizes = [2, 14, 1], strides = [1, 1, 1]} : vector<2x14x13xf32> to vector<2x14x1xf32>
    %319 = vector.extract_strided_slice %315 {offsets = [0, 0, 6], sizes = [2, 14, 1], strides = [1, 1, 1]} : vector<2x14x13xf32> to vector<2x14x1xf32>
    %320 = vector.extract_strided_slice %315 {offsets = [0, 0, 8], sizes = [2, 14, 1], strides = [1, 1, 1]} : vector<2x14x13xf32> to vector<2x14x1xf32>
    %321 = vector.extract_strided_slice %315 {offsets = [0, 0, 10], sizes = [2, 14, 1], strides = [1, 1, 1]} : vector<2x14x13xf32> to vector<2x14x1xf32>
    %322 = vector.extract_strided_slice %315 {offsets = [0, 0, 12], sizes = [2, 14, 1], strides = [1, 1, 1]} : vector<2x14x13xf32> to vector<2x14x1xf32>
    %323 = tpu.concatenate %316, %317, %318, %319, %320, %321, %322 in 2 : vector<2x14x1xf32>, vector<2x14x1xf32>, vector<2x14x1xf32>, vector<2x14x1xf32>, vector<2x14x1xf32>, vector<2x14x1xf32>, vector<2x14x1xf32> -> vector<2x14x7xf32>
    %324 = vector.extract_strided_slice %323 {offsets = [0, 0, 0], sizes = [2, 13, 7], strides = [1, 1, 1]} : vector<2x14x7xf32> to vector<2x13x7xf32>
    %325 = vector.extract_strided_slice %323 {offsets = [0, 1, 0], sizes = [2, 13, 7], strides = [1, 1, 1]} : vector<2x14x7xf32> to vector<2x13x7xf32>
    %326 = arith.maximumf %324, %325 : vector<2x13x7xf32>
    %327 = vector.extract_strided_slice %326 {offsets = [0, 0, 0], sizes = [2, 1, 7], strides = [1, 1, 1]} : vector<2x13x7xf32> to vector<2x1x7xf32>
    %328 = vector.extract_strided_slice %326 {offsets = [0, 2, 0], sizes = [2, 1, 7], strides = [1, 1, 1]} : vector<2x13x7xf32> to vector<2x1x7xf32>
    %329 = vector.extract_strided_slice %326 {offsets = [0, 4, 0], sizes = [2, 1, 7], strides = [1, 1, 1]} : vector<2x13x7xf32> to vector<2x1x7xf32>
    %330 = vector.extract_strided_slice %326 {offsets = [0, 6, 0], sizes = [2, 1, 7], strides = [1, 1, 1]} : vector<2x13x7xf32> to vector<2x1x7xf32>
    %331 = vector.extract_strided_slice %326 {offsets = [0, 8, 0], sizes = [2, 1, 7], strides = [1, 1, 1]} : vector<2x13x7xf32> to vector<2x1x7xf32>
    %332 = vector.extract_strided_slice %326 {offsets = [0, 10, 0], sizes = [2, 1, 7], strides = [1, 1, 1]} : vector<2x13x7xf32> to vector<2x1x7xf32>
    %333 = vector.extract_strided_slice %326 {offsets = [0, 12, 0], sizes = [2, 1, 7], strides = [1, 1, 1]} : vector<2x13x7xf32> to vector<2x1x7xf32>
    %334 = tpu.concatenate %327, %328, %329, %330, %331, %332, %333 in 1 : vector<2x1x7xf32>, vector<2x1x7xf32>, vector<2x1x7xf32>, vector<2x1x7xf32>, vector<2x1x7xf32>, vector<2x1x7xf32>, vector<2x1x7xf32> -> vector<2x7x7xf32>
    %335 = vector.extract_strided_slice %312 {offsets = [0, 0, 0], sizes = [2, 14, 13], strides = [1, 1, 1]} : vector<2x14x14xf32> to vector<2x14x13xf32>
    %336 = vector.extract_strided_slice %312 {offsets = [0, 0, 1], sizes = [2, 14, 13], strides = [1, 1, 1]} : vector<2x14x14xf32> to vector<2x14x13xf32>
    %337 = arith.maximumf %335, %336 : vector<2x14x13xf32>
    %338 = vector.extract_strided_slice %337 {offsets = [0, 0, 0], sizes = [2, 14, 1], strides = [1, 1, 1]} : vector<2x14x13xf32> to vector<2x14x1xf32>
    %339 = vector.extract_strided_slice %337 {offsets = [0, 0, 2], sizes = [2, 14, 1], strides = [1, 1, 1]} : vector<2x14x13xf32> to vector<2x14x1xf32>
    %340 = vector.extract_strided_slice %337 {offsets = [0, 0, 4], sizes = [2, 14, 1], strides = [1, 1, 1]} : vector<2x14x13xf32> to vector<2x14x1xf32>
    %341 = vector.extract_strided_slice %337 {offsets = [0, 0, 6], sizes = [2, 14, 1], strides = [1, 1, 1]} : vector<2x14x13xf32> to vector<2x14x1xf32>
    %342 = vector.extract_strided_slice %337 {offsets = [0, 0, 8], sizes = [2, 14, 1], strides = [1, 1, 1]} : vector<2x14x13xf32> to vector<2x14x1xf32>
    %343 = vector.extract_strided_slice %337 {offsets = [0, 0, 10], sizes = [2, 14, 1], strides = [1, 1, 1]} : vector<2x14x13xf32> to vector<2x14x1xf32>
    %344 = vector.extract_strided_slice %337 {offsets = [0, 0, 12], sizes = [2, 14, 1], strides = [1, 1, 1]} : vector<2x14x13xf32> to vector<2x14x1xf32>
    %345 = tpu.concatenate %338, %339, %340, %341, %342, %343, %344 in 2 : vector<2x14x1xf32>, vector<2x14x1xf32>, vector<2x14x1xf32>, vector<2x14x1xf32>, vector<2x14x1xf32>, vector<2x14x1xf32>, vector<2x14x1xf32> -> vector<2x14x7xf32>
    %346 = vector.extract_strided_slice %345 {offsets = [0, 0, 0], sizes = [2, 13, 7], strides = [1, 1, 1]} : vector<2x14x7xf32> to vector<2x13x7xf32>
    %347 = vector.extract_strided_slice %345 {offsets = [0, 1, 0], sizes = [2, 13, 7], strides = [1, 1, 1]} : vector<2x14x7xf32> to vector<2x13x7xf32>
    %348 = arith.maximumf %346, %347 : vector<2x13x7xf32>
    %349 = vector.extract_strided_slice %348 {offsets = [0, 0, 0], sizes = [2, 1, 7], strides = [1, 1, 1]} : vector<2x13x7xf32> to vector<2x1x7xf32>
    %350 = vector.extract_strided_slice %348 {offsets = [0, 2, 0], sizes = [2, 1, 7], strides = [1, 1, 1]} : vector<2x13x7xf32> to vector<2x1x7xf32>
    %351 = vector.extract_strided_slice %348 {offsets = [0, 4, 0], sizes = [2, 1, 7], strides = [1, 1, 1]} : vector<2x13x7xf32> to vector<2x1x7xf32>
    %352 = vector.extract_strided_slice %348 {offsets = [0, 6, 0], sizes = [2, 1, 7], strides = [1, 1, 1]} : vector<2x13x7xf32> to vector<2x1x7xf32>
    %353 = vector.extract_strided_slice %348 {offsets = [0, 8, 0], sizes = [2, 1, 7], strides = [1, 1, 1]} : vector<2x13x7xf32> to vector<2x1x7xf32>
    %354 = vector.extract_strided_slice %348 {offsets = [0, 10, 0], sizes = [2, 1, 7], strides = [1, 1, 1]} : vector<2x13x7xf32> to vector<2x1x7xf32>
    %355 = vector.extract_strided_slice %348 {offsets = [0, 12, 0], sizes = [2, 1, 7], strides = [1, 1, 1]} : vector<2x13x7xf32> to vector<2x1x7xf32>
    %356 = tpu.concatenate %349, %350, %351, %352, %353, %354, %355 in 1 : vector<2x1x7xf32>, vector<2x1x7xf32>, vector<2x1x7xf32>, vector<2x1x7xf32>, vector<2x1x7xf32>, vector<2x1x7xf32>, vector<2x1x7xf32> -> vector<2x7x7xf32>
    %357 = vector.extract_strided_slice %334 {offsets = [0, 0, 0], sizes = [2, 6, 6], strides = [1, 1, 1]} : vector<2x7x7xf32> to vector<2x6x6xf32>
    %358 = vector.broadcast %16 : f32 to vector<2x6x6xf32>
    %359 = arith.mulf %358, %357 : vector<2x6x6xf32>
    %360 = vector.broadcast %24 : f32 to vector<2x6x6xf32>
    %361 = arith.mulf %360, %357 : vector<2x6x6xf32>
    %362 = vector.extract_strided_slice %334 {offsets = [0, 0, 1], sizes = [2, 6, 6], strides = [1, 1, 1]} : vector<2x7x7xf32> to vector<2x6x6xf32>
    %363 = vector.broadcast %17 : f32 to vector<2x6x6xf32>
    %364 = arith.mulf %363, %362 : vector<2x6x6xf32>
    %365 = arith.addf %359, %364 : vector<2x6x6xf32>
    %366 = vector.broadcast %25 : f32 to vector<2x6x6xf32>
    %367 = arith.mulf %366, %362 : vector<2x6x6xf32>
    %368 = arith.addf %361, %367 : vector<2x6x6xf32>
    %369 = vector.extract_strided_slice %334 {offsets = [0, 1, 0], sizes = [2, 6, 6], strides = [1, 1, 1]} : vector<2x7x7xf32> to vector<2x6x6xf32>
    %370 = vector.broadcast %18 : f32 to vector<2x6x6xf32>
    %371 = arith.mulf %370, %369 : vector<2x6x6xf32>
    %372 = arith.addf %365, %371 : vector<2x6x6xf32>
    %373 = vector.broadcast %26 : f32 to vector<2x6x6xf32>
    %374 = arith.mulf %373, %369 : vector<2x6x6xf32>
    %375 = arith.addf %368, %374 : vector<2x6x6xf32>
    %376 = vector.extract_strided_slice %334 {offsets = [0, 1, 1], sizes = [2, 6, 6], strides = [1, 1, 1]} : vector<2x7x7xf32> to vector<2x6x6xf32>
    %377 = vector.broadcast %19 : f32 to vector<2x6x6xf32>
    %378 = arith.mulf %377, %376 : vector<2x6x6xf32>
    %379 = arith.addf %372, %378 : vector<2x6x6xf32>
    %380 = vector.broadcast %27 : f32 to vector<2x6x6xf32>
    %381 = arith.mulf %380, %376 : vector<2x6x6xf32>
    %382 = arith.addf %375, %381 : vector<2x6x6xf32>
    %383 = vector.extract_strided_slice %356 {offsets = [0, 0, 0], sizes = [2, 6, 6], strides = [1, 1, 1]} : vector<2x7x7xf32> to vector<2x6x6xf32>
    %384 = vector.broadcast %20 : f32 to vector<2x6x6xf32>
    %385 = arith.mulf %384, %383 : vector<2x6x6xf32>
    %386 = arith.addf %379, %385 : vector<2x6x6xf32>
    %387 = vector.broadcast %28 : f32 to vector<2x6x6xf32>
    %388 = arith.mulf %387, %383 : vector<2x6x6xf32>
    %389 = arith.addf %382, %388 : vector<2x6x6xf32>
    %390 = vector.extract_strided_slice %356 {offsets = [0, 0, 1], sizes = [2, 6, 6], strides = [1, 1, 1]} : vector<2x7x7xf32> to vector<2x6x6xf32>
    %391 = vector.broadcast %21 : f32 to vector<2x6x6xf32>
    %392 = arith.mulf %391, %390 : vector<2x6x6xf32>
    %393 = arith.addf %386, %392 : vector<2x6x6xf32>
    %394 = vector.broadcast %29 : f32 to vector<2x6x6xf32>
    %395 = arith.mulf %394, %390 : vector<2x6x6xf32>
    %396 = arith.addf %389, %395 : vector<2x6x6xf32>
    %397 = vector.extract_strided_slice %356 {offsets = [0, 1, 0], sizes = [2, 6, 6], strides = [1, 1, 1]} : vector<2x7x7xf32> to vector<2x6x6xf32>
    %398 = vector.broadcast %22 : f32 to vector<2x6x6xf32>
    %399 = arith.mulf %398, %397 : vector<2x6x6xf32>
    %400 = arith.addf %393, %399 : vector<2x6x6xf32>
    %401 = vector.broadcast %30 : f32 to vector<2x6x6xf32>
    %402 = arith.mulf %401, %397 : vector<2x6x6xf32>
    %403 = arith.addf %396, %402 : vector<2x6x6xf32>
    %404 = vector.extract_strided_slice %356 {offsets = [0, 1, 1], sizes = [2, 6, 6], strides = [1, 1, 1]} : vector<2x7x7xf32> to vector<2x6x6xf32>
    %405 = vector.broadcast %23 : f32 to vector<2x6x6xf32>
    %406 = arith.mulf %405, %404 : vector<2x6x6xf32>
    %407 = arith.addf %400, %406 : vector<2x6x6xf32>
    %408 = vector.broadcast %31 : f32 to vector<2x6x6xf32>
    %409 = arith.mulf %408, %404 : vector<2x6x6xf32>
    %410 = arith.addf %403, %409 : vector<2x6x6xf32>
    %411 = vector.broadcast %34 : f32 to vector<2x6x6xf32>
    %412 = arith.addf %407, %411 : vector<2x6x6xf32>
    %413 = vector.broadcast %35 : f32 to vector<2x6x6xf32>
    %414 = arith.addf %410, %413 : vector<2x6x6xf32>
    %cst_73 = arith.constant 0.000000e+00 : f32
    %415 = vector.broadcast %cst_73 : f32 to vector<2x6x6xf32>
    %416 = arith.maximumf %412, %415 : vector<2x6x6xf32>
    %cst_74 = arith.constant 0.000000e+00 : f32
    %417 = vector.broadcast %cst_74 : f32 to vector<2x6x6xf32>
    %418 = arith.maximumf %414, %417 : vector<2x6x6xf32>
    %419 = vector.shape_cast %416 : vector<2x6x6xf32> to vector<1x2x6x6xf32>
    %cst_75 = arith.constant dense<0.000000e+00> : vector<1xf32>
    %420 = vector.multi_reduction <add>, %419, %cst_75 [1, 2, 3] : vector<1x2x6x6xf32> to vector<1xf32>
    %421 = vector.shape_cast %420 : vector<1xf32> to vector<1x1x1x1xf32>
    %422 = vector.extract %421[0, 0, 0, 0] : f32 from vector<1x1x1x1xf32>
    %423 = arith.mulf %416, %416 : vector<2x6x6xf32>
    %424 = vector.shape_cast %423 : vector<2x6x6xf32> to vector<1x2x6x6xf32>
    %cst_76 = arith.constant dense<0.000000e+00> : vector<1xf32>
    %425 = vector.multi_reduction <add>, %424, %cst_76 [1, 2, 3] : vector<1x2x6x6xf32> to vector<1xf32>
    %426 = vector.shape_cast %425 : vector<1xf32> to vector<1x1x1x1xf32>
    %427 = vector.extract %426[0, 0, 0, 0] : f32 from vector<1x1x1x1xf32>
    %cst_77 = arith.constant 0.013888889 : f32
    %428 = arith.mulf %422, %cst_77 : f32
    %cst_78 = arith.constant 0.013888889 : f32
    %429 = arith.mulf %427, %cst_78 : f32
    %430 = arith.mulf %428, %428 : f32
    %431 = arith.subf %429, %430 : f32
    %cst_79 = arith.constant 9.99999974E-6 : f32
    %432 = arith.addf %431, %cst_79 : f32
    %433 = math.rsqrt %432 : f32
    %434 = arith.mulf %42, %433 : f32
    %435 = arith.mulf %428, %434 : f32
    %436 = arith.subf %50, %435 : f32
    %437 = vector.broadcast %434 : f32 to vector<2x6x6xf32>
    %438 = arith.mulf %416, %437 : vector<2x6x6xf32>
    %439 = vector.broadcast %436 : f32 to vector<2x6x6xf32>
    %440 = arith.addf %438, %439 : vector<2x6x6xf32>
    %441 = vector.shape_cast %418 : vector<2x6x6xf32> to vector<1x2x6x6xf32>
    %cst_80 = arith.constant dense<0.000000e+00> : vector<1xf32>
    %442 = vector.multi_reduction <add>, %441, %cst_80 [1, 2, 3] : vector<1x2x6x6xf32> to vector<1xf32>
    %443 = vector.shape_cast %442 : vector<1xf32> to vector<1x1x1x1xf32>
    %444 = vector.extract %443[0, 0, 0, 0] : f32 from vector<1x1x1x1xf32>
    %445 = arith.mulf %418, %418 : vector<2x6x6xf32>
    %446 = vector.shape_cast %445 : vector<2x6x6xf32> to vector<1x2x6x6xf32>
    %cst_81 = arith.constant dense<0.000000e+00> : vector<1xf32>
    %447 = vector.multi_reduction <add>, %446, %cst_81 [1, 2, 3] : vector<1x2x6x6xf32> to vector<1xf32>
    %448 = vector.shape_cast %447 : vector<1xf32> to vector<1x1x1x1xf32>
    %449 = vector.extract %448[0, 0, 0, 0] : f32 from vector<1x1x1x1xf32>
    %cst_82 = arith.constant 0.013888889 : f32
    %450 = arith.mulf %444, %cst_82 : f32
    %cst_83 = arith.constant 0.013888889 : f32
    %451 = arith.mulf %449, %cst_83 : f32
    %452 = arith.mulf %450, %450 : f32
    %453 = arith.subf %451, %452 : f32
    %cst_84 = arith.constant 9.99999974E-6 : f32
    %454 = arith.addf %453, %cst_84 : f32
    %455 = math.rsqrt %454 : f32
    %456 = arith.mulf %43, %455 : f32
    %457 = arith.mulf %450, %456 : f32
    %458 = arith.subf %51, %457 : f32
    %459 = vector.broadcast %456 : f32 to vector<2x6x6xf32>
    %460 = arith.mulf %418, %459 : vector<2x6x6xf32>
    %461 = vector.broadcast %458 : f32 to vector<2x6x6xf32>
    %462 = arith.addf %460, %461 : vector<2x6x6xf32>
    %463 = vector.extract_strided_slice %440 {offsets = [0, 0, 0], sizes = [2, 6, 5], strides = [1, 1, 1]} : vector<2x6x6xf32> to vector<2x6x5xf32>
    %464 = vector.extract_strided_slice %440 {offsets = [0, 0, 1], sizes = [2, 6, 5], strides = [1, 1, 1]} : vector<2x6x6xf32> to vector<2x6x5xf32>
    %465 = arith.maximumf %463, %464 : vector<2x6x5xf32>
    %466 = vector.extract_strided_slice %465 {offsets = [0, 0, 0], sizes = [2, 6, 1], strides = [1, 1, 1]} : vector<2x6x5xf32> to vector<2x6x1xf32>
    %467 = vector.extract_strided_slice %465 {offsets = [0, 0, 2], sizes = [2, 6, 1], strides = [1, 1, 1]} : vector<2x6x5xf32> to vector<2x6x1xf32>
    %468 = vector.extract_strided_slice %465 {offsets = [0, 0, 4], sizes = [2, 6, 1], strides = [1, 1, 1]} : vector<2x6x5xf32> to vector<2x6x1xf32>
    %469 = tpu.concatenate %466, %467, %468 in 2 : vector<2x6x1xf32>, vector<2x6x1xf32>, vector<2x6x1xf32> -> vector<2x6x3xf32>
    %470 = vector.extract_strided_slice %469 {offsets = [0, 0, 0], sizes = [2, 5, 3], strides = [1, 1, 1]} : vector<2x6x3xf32> to vector<2x5x3xf32>
    %471 = vector.extract_strided_slice %469 {offsets = [0, 1, 0], sizes = [2, 5, 3], strides = [1, 1, 1]} : vector<2x6x3xf32> to vector<2x5x3xf32>
    %472 = arith.maximumf %470, %471 : vector<2x5x3xf32>
    %473 = vector.extract_strided_slice %472 {offsets = [0, 0, 0], sizes = [2, 1, 3], strides = [1, 1, 1]} : vector<2x5x3xf32> to vector<2x1x3xf32>
    %474 = vector.extract_strided_slice %472 {offsets = [0, 2, 0], sizes = [2, 1, 3], strides = [1, 1, 1]} : vector<2x5x3xf32> to vector<2x1x3xf32>
    %475 = vector.extract_strided_slice %472 {offsets = [0, 4, 0], sizes = [2, 1, 3], strides = [1, 1, 1]} : vector<2x5x3xf32> to vector<2x1x3xf32>
    %476 = tpu.concatenate %473, %474, %475 in 1 : vector<2x1x3xf32>, vector<2x1x3xf32>, vector<2x1x3xf32> -> vector<2x3x3xf32>
    %477 = vector.extract_strided_slice %462 {offsets = [0, 0, 0], sizes = [2, 6, 5], strides = [1, 1, 1]} : vector<2x6x6xf32> to vector<2x6x5xf32>
    %478 = vector.extract_strided_slice %462 {offsets = [0, 0, 1], sizes = [2, 6, 5], strides = [1, 1, 1]} : vector<2x6x6xf32> to vector<2x6x5xf32>
    %479 = arith.maximumf %477, %478 : vector<2x6x5xf32>
    %480 = vector.extract_strided_slice %479 {offsets = [0, 0, 0], sizes = [2, 6, 1], strides = [1, 1, 1]} : vector<2x6x5xf32> to vector<2x6x1xf32>
    %481 = vector.extract_strided_slice %479 {offsets = [0, 0, 2], sizes = [2, 6, 1], strides = [1, 1, 1]} : vector<2x6x5xf32> to vector<2x6x1xf32>
    %482 = vector.extract_strided_slice %479 {offsets = [0, 0, 4], sizes = [2, 6, 1], strides = [1, 1, 1]} : vector<2x6x5xf32> to vector<2x6x1xf32>
    %483 = tpu.concatenate %480, %481, %482 in 2 : vector<2x6x1xf32>, vector<2x6x1xf32>, vector<2x6x1xf32> -> vector<2x6x3xf32>
    %484 = vector.extract_strided_slice %483 {offsets = [0, 0, 0], sizes = [2, 5, 3], strides = [1, 1, 1]} : vector<2x6x3xf32> to vector<2x5x3xf32>
    %485 = vector.extract_strided_slice %483 {offsets = [0, 1, 0], sizes = [2, 5, 3], strides = [1, 1, 1]} : vector<2x6x3xf32> to vector<2x5x3xf32>
    %486 = arith.maximumf %484, %485 : vector<2x5x3xf32>
    %487 = vector.extract_strided_slice %486 {offsets = [0, 0, 0], sizes = [2, 1, 3], strides = [1, 1, 1]} : vector<2x5x3xf32> to vector<2x1x3xf32>
    %488 = vector.extract_strided_slice %486 {offsets = [0, 2, 0], sizes = [2, 1, 3], strides = [1, 1, 1]} : vector<2x5x3xf32> to vector<2x1x3xf32>
    %489 = vector.extract_strided_slice %486 {offsets = [0, 4, 0], sizes = [2, 1, 3], strides = [1, 1, 1]} : vector<2x5x3xf32> to vector<2x1x3xf32>
    %490 = tpu.concatenate %487, %488, %489 in 1 : vector<2x1x3xf32>, vector<2x1x3xf32>, vector<2x1x3xf32> -> vector<2x3x3xf32>
    %491 = vector.extract_strided_slice %476 {offsets = [0, 0, 0], sizes = [2, 3, 2], strides = [1, 1, 1]} : vector<2x3x3xf32> to vector<2x3x2xf32>
    %492 = vector.extract_strided_slice %476 {offsets = [0, 0, 1], sizes = [2, 3, 2], strides = [1, 1, 1]} : vector<2x3x3xf32> to vector<2x3x2xf32>
    %493 = arith.addf %491, %492 : vector<2x3x2xf32>
    %494 = vector.extract_strided_slice %493 {offsets = [0, 0, 0], sizes = [2, 3, 1], strides = [1, 1, 1]} : vector<2x3x2xf32> to vector<2x3x1xf32>
    %495 = vector.extract_strided_slice %494 {offsets = [0, 0, 0], sizes = [2, 2, 1], strides = [1, 1, 1]} : vector<2x3x1xf32> to vector<2x2x1xf32>
    %496 = vector.extract_strided_slice %494 {offsets = [0, 1, 0], sizes = [2, 2, 1], strides = [1, 1, 1]} : vector<2x3x1xf32> to vector<2x2x1xf32>
    %497 = arith.addf %495, %496 : vector<2x2x1xf32>
    %498 = vector.extract_strided_slice %497 {offsets = [0, 0, 0], sizes = [2, 1, 1], strides = [1, 1, 1]} : vector<2x2x1xf32> to vector<2x1x1xf32>
    %cst_85 = arith.constant 2.500000e-01 : f32
    %499 = vector.broadcast %cst_85 : f32 to vector<2x1x1xf32>
    %500 = arith.mulf %498, %499 : vector<2x1x1xf32>
    %501 = vector.extract_strided_slice %490 {offsets = [0, 0, 0], sizes = [2, 3, 2], strides = [1, 1, 1]} : vector<2x3x3xf32> to vector<2x3x2xf32>
    %502 = vector.extract_strided_slice %490 {offsets = [0, 0, 1], sizes = [2, 3, 2], strides = [1, 1, 1]} : vector<2x3x3xf32> to vector<2x3x2xf32>
    %503 = arith.addf %501, %502 : vector<2x3x2xf32>
    %504 = vector.extract_strided_slice %503 {offsets = [0, 0, 0], sizes = [2, 3, 1], strides = [1, 1, 1]} : vector<2x3x2xf32> to vector<2x3x1xf32>
    %505 = vector.extract_strided_slice %504 {offsets = [0, 0, 0], sizes = [2, 2, 1], strides = [1, 1, 1]} : vector<2x3x1xf32> to vector<2x2x1xf32>
    %506 = vector.extract_strided_slice %504 {offsets = [0, 1, 0], sizes = [2, 2, 1], strides = [1, 1, 1]} : vector<2x3x1xf32> to vector<2x2x1xf32>
    %507 = arith.addf %505, %506 : vector<2x2x1xf32>
    %508 = vector.extract_strided_slice %507 {offsets = [0, 0, 0], sizes = [2, 1, 1], strides = [1, 1, 1]} : vector<2x2x1xf32> to vector<2x1x1xf32>
    %cst_86 = arith.constant 2.500000e-01 : f32
    %509 = vector.broadcast %cst_86 : f32 to vector<2x1x1xf32>
    %510 = arith.mulf %508, %509 : vector<2x1x1xf32>
    %511 = vector.shape_cast %500 : vector<2x1x1xf32> to vector<2x1xf32>
    %512 = vector.shape_cast %510 : vector<2x1x1xf32> to vector<2x1xf32>
    %513 = tpu.concatenate %511, %512 in 1 : vector<2x1xf32>, vector<2x1xf32> -> vector<2x2xf32>
    %c0_87 = arith.constant 0 : index
    %c0_88 = arith.constant 0 : index
    %514 = vector.load %arg7[%c0_87, %c0_88] : memref<2x2xf32, #tpu.memory_space<vmem>>, vector<2x2xf32>
    tpu.vector_store %arg7[%c0_87, %c0_88], %513 {strides = array<i32>} : memref<2x2xf32, #tpu.memory_space<vmem>>, vector<2x2xf32>,
    return
  }
}

</mosaic_0001>

<llo_original>
// kernel: tpu_custom_call.1
$region0: #{tpu_custom_call.1}
  #allocation0 [shape = 'u32[]', space=smem, size = 0x4, offset = 0x4, fixed_abs, tag = 'smem constant byte address 0x4 - core index']
  #allocation1 [shape = 'u32[144,128]{1,0:T(1,128)}', space=vmem, size = 0x12000, scoped, tag = 'internal scratch']
  %s0 = inlined_call_operand.hbm [shape: f32[2,2,16,16], index: 0, kind: input, shape index: {}]
  %s1 = inlined_call_operand.vmem [shape: f32[16], index: 1, kind: input, shape index: {}]
  %s2 = inlined_call_operand.vmem [shape: f32[2], index: 2, kind: input, shape index: {}]
  %s3 = inlined_call_operand.vmem [shape: f32[16], index: 3, kind: input, shape index: {}]
  %s4 = inlined_call_operand.vmem [shape: f32[2], index: 4, kind: input, shape index: {}]
  %s5 = inlined_call_operand.vmem [shape: f32[8], index: 5, kind: input, shape index: {}]
  %s6 = inlined_call_operand.vmem [shape: f32[8], index: 6, kind: input, shape index: {}]
  %s7 = inlined_call_operand.hbm [shape: f32[2,2], index: 7, kind: output, shape index: {}]
  %s8 = sld [smem:[#allocation0]]
  $region66: #{tpu_custom_call.1} parent=0
    _
  %s10 = ssub.s32 1, %s8
  %s11 = scalar_select 0, %s10, %s8
  $region1: #{tpu_custom_call.1} parent=0
    #allocation2 [shape = 'u8[32768]{0}', space=vmem, size = 0x8000, scoped, tag = 'input window, operand 0, single buffered']
    #allocation3 [shape = 's32[1]{0}', space=sflag, size = 0x4, scoped, tag = 'scoped memory for tpu_custom_call.1']
    #allocation4 [shape = 's32[1]{0}', space=sflag, size = 0x4, scoped, tag = 'scoped memory for tpu_custom_call.1']
    #allocation5 [shape = 's32[1]{0}', space=sflag, size = 0x4, scoped, tag = 'scoped memory for tpu_custom_call.1']
    #allocation6 [shape = 'u8[512]{0}', space=smem, size = 0x200, scoped, tag = 'input window, operand 1, single buffered']
    #allocation7 [shape = 'u8[512]{0}', space=smem, size = 0x200, scoped, tag = 'input window, operand 2, single buffered']
    #allocation8 [shape = 's32[1]{0}', space=sflag, size = 0x4, scoped, tag = 'scoped memory for tpu_custom_call.1']
    #allocation9 [shape = 'u8[512]{0}', space=smem, size = 0x200, scoped, tag = 'input window, operand 3, single buffered']
    #allocation10 [shape = 'u8[512]{0}', space=smem, size = 0x200, scoped, tag = 'input window, operand 4, single buffered']
    #allocation11 [shape = 's32[1]{0}', space=sflag, size = 0x4, scoped, tag = 'scoped memory for tpu_custom_call.1']
    #allocation12 [shape = 'u8[512]{0}', space=smem, size = 0x200, scoped, tag = 'input window, operand 5, single buffered']
    #allocation13 [shape = 'u8[512]{0}', space=smem, size = 0x200, scoped, tag = 'input window, operand 6, single buffered']
    #allocation14 [shape = 's32[1]{0}', space=sflag, size = 0x4, scoped, tag = 'scoped memory for tpu_custom_call.1']
    #allocation15 [shape = 'u8[1024]{0}', space=vmem, size = 0x400, scoped, tag = 'output window, operand 0, single buffered']
    %12 = vsyncpa [#allocation3], 0
    %13 = vsyncpa [#allocation5], 0
    %14 = vsyncpa [#allocation8], 0
    %15 = vsyncpa [#allocation11], 0
    %16 = vsyncpa [#allocation14], 0
    %17 = vsyncpa [#allocation4], 0
    // Predicated region
    $region2: #{tpu_custom_call.1} parent=1 // pred_check
      _
    $region3: #{tpu_custom_call.1} parent=1 // pred_check_branch
      %19 = sbr.rel (0) target = $region5
    $region4: #{tpu_custom_call.1} parent=1 // pred_region
      %s21 = ssub.s32 1024, 1024
      %22 = vsyncadd [#allocation3], %s21
      %s23 = sshll.u32 [#allocation2], 4
      %s24 = int_to_ptr.vmem [resolvable:$true] %s23
      %29 = dma.hbm_to_vmem [thread:$0]  %s0, 1024, %s24, [#allocation3], 128, 128, 8
    $region5: #{tpu_custom_call.1} parent=1 // pred_fallthru
      _
    // Predicated region
    $region6: #{tpu_custom_call.1} parent=1 // pred_check
      _
    $region7: #{tpu_custom_call.1} parent=1 // pred_check_branch
      %31 = sbr.rel (0) target = $region9
    $region8: #{tpu_custom_call.1} parent=1 // pred_region
      %s33 = ssub.s32 16, 16
      %34 = vsyncadd [#allocation5], %s33
      %s36 = sshll.u32 %s1, 4
      %s37 = int_to_ptr.vmem [resolvable:$true] %s36
      %39 = dma.vmem_to_smem %s37, 16, [#allocation6], [#allocation5]
    $region9: #{tpu_custom_call.1} parent=1 // pred_fallthru
      _
    // Predicated region
    $region10: #{tpu_custom_call.1} parent=1 // pred_check
      _
    $region11: #{tpu_custom_call.1} parent=1 // pred_check_branch
      %41 = sbr.rel (0) target = $region13
    $region12: #{tpu_custom_call.1} parent=1 // pred_region
      %s43 = ssub.s32 16, 16
      %44 = vsyncadd [#allocation8], %s43
      %s46 = sshll.u32 %s2, 4
      %s47 = int_to_ptr.vmem [resolvable:$true] %s46
      %49 = dma.vmem_to_smem %s47, 16, [#allocation7], [#allocation8]
    $region13: #{tpu_custom_call.1} parent=1 // pred_fallthru
      _
    // Predicated region
    $region14: #{tpu_custom_call.1} parent=1 // pred_check
      _
    $region15: #{tpu_custom_call.1} parent=1 // pred_check_branch
      %51 = sbr.rel (0) target = $region17
    $region16: #{tpu_custom_call.1} parent=1 // pred_region
      %s53 = ssub.s32 16, 16
      %54 = vsyncadd [#allocation8], %s53
      %s56 = sshll.u32 %s3, 4
      %s57 = int_to_ptr.vmem [resolvable:$true] %s56
      %59 = dma.vmem_to_smem %s57, 16, [#allocation9], [#allocation8]
    $region17: #{tpu_custom_call.1} parent=1 // pred_fallthru
      _
    // Predicated region
    $region18: #{tpu_custom_call.1} parent=1 // pred_check
      _
    $region19: #{tpu_custom_call.1} parent=1 // pred_check_branch
      %61 = sbr.rel (0) target = $region21
    $region20: #{tpu_custom_call.1} parent=1 // pred_region
      %s63 = ssub.s32 16, 16
      %64 = vsyncadd [#allocation11], %s63
      %s66 = sshll.u32 %s4, 4
      %s67 = int_to_ptr.vmem [resolvable:$true] %s66
      %69 = dma.vmem_to_smem %s67, 16, [#allocation10], [#allocation11]
    $region21: #{tpu_custom_call.1} parent=1 // pred_fallthru
      _
    // Predicated region
    $region22: #{tpu_custom_call.1} parent=1 // pred_check
      _
    $region23: #{tpu_custom_call.1} parent=1 // pred_check_branch
      %71 = sbr.rel (0) target = $region25
    $region24: #{tpu_custom_call.1} parent=1 // pred_region
      %s73 = ssub.s32 16, 16
      %74 = vsyncadd [#allocation11], %s73
      %s76 = sshll.u32 %s5, 4
      %s77 = int_to_ptr.vmem [resolvable:$true] %s76
      %79 = dma.vmem_to_smem %s77, 16, [#allocation12], [#allocation11]
    $region25: #{tpu_custom_call.1} parent=1 // pred_fallthru
      _
    // Predicated region
    $region26: #{tpu_custom_call.1} parent=1 // pred_check
      _
    $region27: #{tpu_custom_call.1} parent=1 // pred_check_branch
      %81 = sbr.rel (0) target = $region29
    $region28: #{tpu_custom_call.1} parent=1 // pred_region
      %s83 = ssub.s32 16, 16
      %84 = vsyncadd [#allocation14], %s83
      %s86 = sshll.u32 %s6, 4
      %s87 = int_to_ptr.vmem [resolvable:$true] %s86
      %89 = dma.vmem_to_smem %s87, 16, [#allocation13], [#allocation14]
    $region29: #{tpu_custom_call.1} parent=1 // pred_fallthru
      _
    // Predicated region
    $region30: #{tpu_custom_call.1} parent=1 // pred_check
      _
    $region31: #{tpu_custom_call.1} parent=1 // pred_check_branch
      %91 = sbr.rel (0) target = $region33
    $region32: #{tpu_custom_call.1} parent=1 // pred_region
      %92 = dma.done [#allocation3], 1024
    $region33: #{tpu_custom_call.1} parent=1 // pred_fallthru
      _
    // Predicated region
    $region34: #{tpu_custom_call.1} parent=1 // pred_check
      _
    $region35: #{tpu_custom_call.1} parent=1 // pred_check_branch
      %94 = sbr.rel (0) target = $region37
    $region36: #{tpu_custom_call.1} parent=1 // pred_region
      %95 = dma.done [#allocation5], 16
    $region37: #{tpu_custom_call.1} parent=1 // pred_fallthru
      _
    // Predicated region
    $region38: #{tpu_custom_call.1} parent=1 // pred_check
      _
    $region39: #{tpu_custom_call.1} parent=1 // pred_check_branch
      %97 = sbr.rel (0) target = $region41
    $region40: #{tpu_custom_call.1} parent=1 // pred_region
      %98 = dma.done [#allocation8], 16
    $region41: #{tpu_custom_call.1} parent=1 // pred_fallthru
      _
    // Predicated region
    $region42: #{tpu_custom_call.1} parent=1 // pred_check
      _
    $region43: #{tpu_custom_call.1} parent=1 // pred_check_branch
      %100 = sbr.rel (0) target = $region45
    $region44: #{tpu_custom_call.1} parent=1 // pred_region
      %101 = dma.done [#allocation8], 16
    $region45: #{tpu_custom_call.1} parent=1 // pred_fallthru
      _
    // Predicated region
    $region46: #{tpu_custom_call.1} parent=1 // pred_check
      _
    $region47: #{tpu_custom_call.1} parent=1 // pred_check_branch
      %103 = sbr.rel (0) target = $region49
    $region48: #{tpu_custom_call.1} parent=1 // pred_region
      %104 = dma.done [#allocation11], 16
    $region49: #{tpu_custom_call.1} parent=1 // pred_fallthru
      _
    // Predicated region
    $region50: #{tpu_custom_call.1} parent=1 // pred_check
      _
    $region51: #{tpu_custom_call.1} parent=1 // pred_check_branch
      %106 = sbr.rel (0) target = $region53
    $region52: #{tpu_custom_call.1} parent=1 // pred_region
      %107 = dma.done [#allocation11], 16
    $region53: #{tpu_custom_call.1} parent=1 // pred_fallthru
      _
    // Predicated region
    $region54: #{tpu_custom_call.1} parent=1 // pred_check
      _
    $region55: #{tpu_custom_call.1} parent=1 // pred_check_branch
      %109 = sbr.rel (0) target = $region57
    $region56: #{tpu_custom_call.1} parent=1 // pred_region
      %110 = dma.done [#allocation14], 16
    $region57: #{tpu_custom_call.1} parent=1 // pred_fallthru
      _
    %111 = sfence
    %s112 = sld [smem:[#allocation6]]
    %s113 = sld [smem:[#allocation6 + $0x1]]
    %s114 = sld [smem:[#allocation6 + $0x2]]
    %s115 = sld [smem:[#allocation6 + $0x3]]
    %s116 = sld [smem:[#allocation6 + $0x4]]
    %s117 = sld [smem:[#allocation6 + $0x5]]
    %s118 = sld [smem:[#allocation6 + $0x6]]
    %s119 = sld [smem:[#allocation6 + $0x7]]
    %s120 = sld [smem:[#allocation6 + $0x8]]
    %s121 = sld [smem:[#allocation6 + $0x9]]
    %s122 = sld [smem:[#allocation6 + $0xa]]
    %s123 = sld [smem:[#allocation6 + $0xb]]
    %s124 = sld [smem:[#allocation6 + $0xc]]
    %s125 = sld [smem:[#allocation6 + $0xd]]
    %s126 = sld [smem:[#allocation6 + $0xe]]
    %s127 = sld [smem:[#allocation6 + $0xf]]
    %s128 = sld [smem:[#allocation9]]
    %s129 = sld [smem:[#allocation9 + $0x1]]
    %s130 = sld [smem:[#allocation9 + $0x2]]
    %s131 = sld [smem:[#allocation9 + $0x3]]
    %s132 = sld [smem:[#allocation9 + $0x4]]
    %s133 = sld [smem:[#allocation9 + $0x5]]
    %s134 = sld [smem:[#allocation9 + $0x6]]
    %s135 = sld [smem:[#allocation9 + $0x7]]
    %s136 = sld [smem:[#allocation9 + $0x8]]
    %s137 = sld [smem:[#allocation9 + $0x9]]
    %s138 = sld [smem:[#allocation9 + $0xa]]
    %s139 = sld [smem:[#allocation9 + $0xb]]
    %s140 = sld [smem:[#allocation9 + $0xc]]
    %s141 = sld [smem:[#allocation9 + $0xd]]
    %s142 = sld [smem:[#allocation9 + $0xe]]
    %s143 = sld [smem:[#allocation9 + $0xf]]
    %s144 = sld [smem:[#allocation7]]
    %s145 = sld [smem:[#allocation7 + $0x1]]
    %s146 = sld [smem:[#allocation10]]
    %s147 = sld [smem:[#allocation10 + $0x1]]
    %s148 = sld [smem:[#allocation12]]
    %s149 = sld [smem:[#allocation12 + $0x1]]
    %s150 = sld [smem:[#allocation12 + $0x2]]
    %s151 = sld [smem:[#allocation12 + $0x3]]
    %s152 = sld [smem:[#allocation12 + $0x4]]
    %s153 = sld [smem:[#allocation12 + $0x5]]
    %s154 = sld [smem:[#allocation12 + $0x6]]
    %s155 = sld [smem:[#allocation12 + $0x7]]
    %s156 = sld [smem:[#allocation13]]
    %s157 = sld [smem:[#allocation13 + $0x1]]
    %s158 = sld [smem:[#allocation13 + $0x2]]
    %s159 = sld [smem:[#allocation13 + $0x3]]
    %s160 = sld [smem:[#allocation13 + $0x4]]
    %s161 = sld [smem:[#allocation13 + $0x5]]
    %s162 = sld [smem:[#allocation13 + $0x6]]
    %s163 = sld [smem:[#allocation13 + $0x7]]
    %v164 = vld [vmem:[#allocation2] sm:$0xff]
    %v165 = vld [vmem:[#allocation2 + $0x8] sm:$0xff]
    %v166 = vld [vmem:[#allocation2 + $0x10] sm:$0xff]
    %v167 = vld [vmem:[#allocation2 + $0x18] sm:$0xff]
    %v168 = vld [vmem:[#allocation2 + $0x20] sm:$0xff]
    %v169 = vld [vmem:[#allocation2 + $0x28] sm:$0xff]
    %v170 = vld [vmem:[#allocation2 + $0x30] sm:$0xff]
    %v171 = vld [vmem:[#allocation2 + $0x38] sm:$0xff]
    %v172 = vstv %s112
    %v173 = vmul.f32 %v172, %v164
    %v174 = vmul.f32 %v172, %v165
    %v175 = vmul.f32 %v172, %v168
    %v176 = vmul.f32 %v172, %v169
    %v177 = vstv %s120
    %v178 = vmul.f32 %v177, %v164
    %v179 = vmul.f32 %v177, %v165
    %v180 = vmul.f32 %v177, %v168
    %v181 = vmul.f32 %v177, %v169
    %v182 = vstv %s113
    %v183 = vmul.f32 %v182, %v164
    %v184 = vmul.f32 %v182, %v165
    %v185 = vmul.f32 %v182, %v168
    %v186 = vmul.f32 %v182, %v169
    %191 = vrot.lane.b32.xlu0 %v183, 127
    %v192 = vpop.permute.xlu0 %191
    %193 = vrot.lane.b32.xlu0 %v184, 127
    %v194 = vpop.permute.xlu0 %193
    %195 = vrot.lane.b32.xlu0 %v185, 127
    %v196 = vpop.permute.xlu0 %195
    %197 = vrot.lane.b32.xlu0 %v186, 127
    %v198 = vpop.permute.xlu0 %197
    %v203 = vadd.f32 %v173, %v192
    %v204 = vadd.f32 %v174, %v194
    %v205 = vadd.f32 %v175, %v196
    %v206 = vadd.f32 %v176, %v198
    %v207 = vstv %s121
    %v208 = vmul.f32 %v207, %v164
    %v209 = vmul.f32 %v207, %v165
    %v210 = vmul.f32 %v207, %v168
    %v211 = vmul.f32 %v207, %v169
    %216 = vrot.lane.b32.xlu0 %v208, 127
    %v217 = vpop.permute.xlu0 %216
    %218 = vrot.lane.b32.xlu0 %v209, 127
    %v219 = vpop.permute.xlu0 %218
    %220 = vrot.lane.b32.xlu0 %v210, 127
    %v221 = vpop.permute.xlu0 %220
    %222 = vrot.lane.b32.xlu0 %v211, 127
    %v223 = vpop.permute.xlu0 %222
    %v228 = vadd.f32 %v178, %v217
    %v229 = vadd.f32 %v179, %v219
    %v230 = vadd.f32 %v180, %v221
    %v231 = vadd.f32 %v181, %v223
    %v232 = vstv %s114
    %v233 = vmul.f32 %v232, %v164
    %v234 = vmul.f32 %v232, %v165
    %v235 = vmul.f32 %v232, %v168
    %v236 = vmul.f32 %v232, %v169
    %vm241 = vcmask 1046528
    %v242 = vrot.slane %v233, 1
    %v243 = vrot.slane %v234, 1
    %v244 = vsel %vm241, %v242, %v243
    %v245 = vrot.slane %v235, 1
    %v246 = vrot.slane %v236, 1
    %v247 = vsel %vm241, %v245, %v246
    %v252 = vadd.f32 %v203, %v244
    %v253 = vadd.f32 %v204, %v243
    %v254 = vadd.f32 %v205, %v247
    %v255 = vadd.f32 %v206, %v246
    %v256 = vstv %s122
    %v257 = vmul.f32 %v256, %v164
    %v258 = vmul.f32 %v256, %v165
    %v259 = vmul.f32 %v256, %v168
    %v260 = vmul.f32 %v256, %v169
    %v265 = vrot.slane %v257, 1
    %v266 = vrot.slane %v258, 1
    %v267 = vsel %vm241, %v265, %v266
    %v268 = vrot.slane %v259, 1
    %v269 = vrot.slane %v260, 1
    %v270 = vsel %vm241, %v268, %v269
    %v275 = vadd.f32 %v228, %v267
    %v276 = vadd.f32 %v229, %v266
    %v277 = vadd.f32 %v230, %v270
    %v278 = vadd.f32 %v231, %v269
    %v279 = vstv %s115
    %v280 = vmul.f32 %v279, %v164
    %v281 = vmul.f32 %v279, %v165
    %v282 = vmul.f32 %v279, %v168
    %v283 = vmul.f32 %v279, %v169
    %v288 = vrot.slane %v280, 1
    %v289 = vrot.slane %v281, 1
    %v290 = vsel %vm241, %v288, %v289
    %v291 = vrot.slane %v282, 1
    %v292 = vrot.slane %v283, 1
    %v293 = vsel %vm241, %v291, %v292
    %294 = vrot.lane.b32.xlu0 %v290, 127
    %v295 = vpop.permute.xlu0 %294
    %296 = vrot.lane.b32.xlu0 %v289, 127
    %v297 = vpop.permute.xlu0 %296
    %298 = vrot.lane.b32.xlu0 %v293, 127
    %v299 = vpop.permute.xlu0 %298
    %300 = vrot.lane.b32.xlu0 %v292, 127
    %v301 = vpop.permute.xlu0 %300
    %v306 = vadd.f32 %v252, %v295
    %v307 = vadd.f32 %v253, %v297
    %v308 = vadd.f32 %v254, %v299
    %v309 = vadd.f32 %v255, %v301
    %v310 = vstv %s123
    %v311 = vmul.f32 %v310, %v164
    %v312 = vmul.f32 %v310, %v165
    %v313 = vmul.f32 %v310, %v168
    %v314 = vmul.f32 %v310, %v169
    %v319 = vrot.slane %v311, 1
    %v320 = vrot.slane %v312, 1
    %v321 = vsel %vm241, %v319, %v320
    %v322 = vrot.slane %v313, 1
    %v323 = vrot.slane %v314, 1
    %v324 = vsel %vm241, %v322, %v323
    %325 = vrot.lane.b32.xlu0 %v321, 127
    %v326 = vpop.permute.xlu0 %325
    %327 = vrot.lane.b32.xlu0 %v320, 127
    %v328 = vpop.permute.xlu0 %327
    %329 = vrot.lane.b32.xlu0 %v324, 127
    %v330 = vpop.permute.xlu0 %329
    %331 = vrot.lane.b32.xlu0 %v323, 127
    %v332 = vpop.permute.xlu0 %331
    %v337 = vadd.f32 %v275, %v326
    %v338 = vadd.f32 %v276, %v328
    %v339 = vadd.f32 %v277, %v330
    %v340 = vadd.f32 %v278, %v332
    %v341 = vstv %s116
    %v342 = vmul.f32 %v341, %v166
    %v343 = vmul.f32 %v341, %v167
    %v344 = vmul.f32 %v341, %v170
    %v345 = vmul.f32 %v341, %v171
    %v346 = vadd.f32 %v306, %v342
    %v347 = vadd.f32 %v307, %v343
    %v348 = vadd.f32 %v308, %v344
    %v349 = vadd.f32 %v309, %v345
    %v350 = vstv %s124
    %v351 = vmul.f32 %v350, %v166
    %v352 = vmul.f32 %v350, %v167
    %v353 = vmul.f32 %v350, %v170
    %v354 = vmul.f32 %v350, %v171
    %v355 = vadd.f32 %v337, %v351
    %v356 = vadd.f32 %v338, %v352
    %v357 = vadd.f32 %v339, %v353
    %v358 = vadd.f32 %v340, %v354
    %v359 = vstv %s117
    %v360 = vmul.f32 %v359, %v166
    %v361 = vmul.f32 %v359, %v167
    %v362 = vmul.f32 %v359, %v170
    %v363 = vmul.f32 %v359, %v171
    %368 = vrot.lane.b32.xlu0 %v360, 127
    %v369 = vpop.permute.xlu0 %368
    %370 = vrot.lane.b32.xlu0 %v361, 127
    %v371 = vpop.permute.xlu0 %370
    %372 = vrot.lane.b32.xlu0 %v362, 127
    %v373 = vpop.permute.xlu0 %372
    %374 = vrot.lane.b32.xlu0 %v363, 127
    %v375 = vpop.permute.xlu0 %374
    %v380 = vadd.f32 %v346, %v369
    %v381 = vadd.f32 %v347, %v371
    %v382 = vadd.f32 %v348, %v373
    %v383 = vadd.f32 %v349, %v375
    %v384 = vstv %s125
    %v385 = vmul.f32 %v384, %v166
    %v386 = vmul.f32 %v384, %v167
    %v387 = vmul.f32 %v384, %v170
    %v388 = vmul.f32 %v384, %v171
    %393 = vrot.lane.b32.xlu0 %v385, 127
    %v394 = vpop.permute.xlu0 %393
    %395 = vrot.lane.b32.xlu0 %v386, 127
    %v396 = vpop.permute.xlu0 %395
    %397 = vrot.lane.b32.xlu0 %v387, 127
    %v398 = vpop.permute.xlu0 %397
    %399 = vrot.lane.b32.xlu0 %v388, 127
    %v400 = vpop.permute.xlu0 %399
    %v405 = vadd.f32 %v355, %v394
    %v406 = vadd.f32 %v356, %v396
    %v407 = vadd.f32 %v357, %v398
    %v408 = vadd.f32 %v358, %v400
    %v409 = vstv %s118
    %v410 = vmul.f32 %v409, %v166
    %v411 = vmul.f32 %v409, %v167
    %v412 = vmul.f32 %v409, %v170
    %v413 = vmul.f32 %v409, %v171
    %v418 = vrot.slane %v410, 1
    %v419 = vrot.slane %v411, 1
    %v420 = vsel %vm241, %v418, %v419
    %v421 = vrot.slane %v412, 1
    %v422 = vrot.slane %v413, 1
    %v423 = vsel %vm241, %v421, %v422
    %v428 = vadd.f32 %v380, %v420
    %v429 = vadd.f32 %v381, %v419
    %v430 = vadd.f32 %v382, %v423
    %v431 = vadd.f32 %v383, %v422
    %v432 = vstv %s126
    %v433 = vmul.f32 %v432, %v166
    %v434 = vmul.f32 %v432, %v167
    %v435 = vmul.f32 %v432, %v170
    %v436 = vmul.f32 %v432, %v171
    %v441 = vrot.slane %v433, 1
    %v442 = vrot.slane %v434, 1
    %v443 = vsel %vm241, %v441, %v442
    %v444 = vrot.slane %v435, 1
    %v445 = vrot.slane %v436, 1
    %v446 = vsel %vm241, %v444, %v445
    %v451 = vadd.f32 %v405, %v443
    %v452 = vadd.f32 %v406, %v442
    %v453 = vadd.f32 %v407, %v446
    %v454 = vadd.f32 %v408, %v445
    %v455 = vstv %s119
    %v456 = vmul.f32 %v455, %v166
    %v457 = vmul.f32 %v455, %v167
    %v458 = vmul.f32 %v455, %v170
    %v459 = vmul.f32 %v455, %v171
    %v464 = vrot.slane %v456, 1
    %v465 = vrot.slane %v457, 1
    %v466 = vsel %vm241, %v464, %v465
    %v467 = vrot.slane %v458, 1
    %v468 = vrot.slane %v459, 1
    %v469 = vsel %vm241, %v467, %v468
    %470 = vrot.lane.b32.xlu0 %v466, 127
    %v471 = vpop.permute.xlu0 %470
    %472 = vrot.lane.b32.xlu0 %v465, 127
    %v473 = vpop.permute.xlu0 %472
    %474 = vrot.lane.b32.xlu0 %v469, 127
    %v475 = vpop.permute.xlu0 %474
    %476 = vrot.lane.b32.xlu0 %v468, 127
    %v477 = vpop.permute.xlu0 %476
    %v482 = vadd.f32 %v428, %v471
    %v483 = vadd.f32 %v429, %v473
    %v484 = vadd.f32 %v430, %v475
    %v485 = vadd.f32 %v431, %v477
    %v486 = vstv %s127
    %v487 = vmul.f32 %v486, %v166
    %v488 = vmul.f32 %v486, %v167
    %v489 = vmul.f32 %v486, %v170
    %v490 = vmul.f32 %v486, %v171
    %v495 = vrot.slane %v487, 1
    %v496 = vrot.slane %v488, 1
    %v497 = vsel %vm241, %v495, %v496
    %v498 = vrot.slane %v489, 1
    %v499 = vrot.slane %v490, 1
    %v500 = vsel %vm241, %v498, %v499
    %501 = vrot.lane.b32.xlu0 %v497, 127
    %v502 = vpop.permute.xlu0 %501
    %503 = vrot.lane.b32.xlu0 %v496, 127
    %v504 = vpop.permute.xlu0 %503
    %505 = vrot.lane.b32.xlu0 %v500, 127
    %v506 = vpop.permute.xlu0 %505
    %507 = vrot.lane.b32.xlu0 %v499, 127
    %v508 = vpop.permute.xlu0 %507
    %v513 = vadd.f32 %v451, %v502
    %v514 = vadd.f32 %v452, %v504
    %v515 = vadd.f32 %v453, %v506
    %v516 = vadd.f32 %v454, %v508
    %v517 = vstv %s144
    %v518 = vadd.f32 %v482, %v517
    %v519 = vadd.f32 %v483, %v517
    %v520 = vadd.f32 %v484, %v517
    %v521 = vadd.f32 %v485, %v517
    %v522 = vstv %s145
    %v523 = vadd.f32 %v513, %v522
    %v524 = vadd.f32 %v514, %v522
    %v525 = vadd.f32 %v515, %v522
    %v526 = vadd.f32 %v516, %v522
    %vm527 = vcmask 121856
    %v528 = vsel %vm527, %v518, 0.0
    %vm529 = vcmask 120832
    %v530 = vsel %vm529, %v519, 0.0
    %v531 = vadd.f32 %v528, %v530
    %v532 = vsel %vm527, %v520, 0.0
    %v533 = vadd.f32 %v531, %v532
    %v534 = vsel %vm529, %v521, 0.0
    %v535 = vadd.f32 %v533, %v534
    %536 = vadd.xlane.f32.xlu0 %v535
    %v537 = vpop.xlane.xlu0 %536
    %v538 = vrot.slane %v537, 4
    %v539 = vadd.f32 %v537, %v538
    %v540 = vrot.slane %v539, 2
    %v541 = vadd.f32 %v539, %v540
    %v542 = vrot.slane %v541, 1
    %v543 = vadd.f32 %v541, %v542
    %s544 = vtos %v543
    %v545 = vmul.f32 %v518, %v518
    %v546 = vmul.f32 %v519, %v519
    %v547 = vmul.f32 %v520, %v520
    %v548 = vmul.f32 %v521, %v521
    %v549 = vsel %vm527, %v545, 0.0
    %v550 = vsel %vm529, %v546, 0.0
    %v551 = vadd.f32 %v549, %v550
    %v552 = vsel %vm527, %v547, 0.0
    %v553 = vadd.f32 %v551, %v552
    %v554 = vsel %vm529, %v548, 0.0
    %v555 = vadd.f32 %v553, %v554
    %556 = vadd.xlane.f32.xlu0 %v555
    %v557 = vpop.xlane.xlu0 %556
    %v558 = vrot.slane %v557, 4
    %v559 = vadd.f32 %v557, %v558
    %v560 = vrot.slane %v559, 2
    %v561 = vadd.f32 %v559, %v560
    %v562 = vrot.slane %v561, 1
    %v563 = vadd.f32 %v561, %v562
    %s564 = vtos %v563
    %s565 = smul.f32 %s544, 0.0022222223
    %s566 = smul.f32 %s564, 0.0022222223
    %s567 = smul.f32 %s565, %s565
    %s568 = ssub.f32 %s566, %s567
    %s569 = sadd.f32 %s568, 1e-05
    %v570 = vstv %s569
    %v571 = vrsqrt.pop %v570
    %s572 = vtos %v571
    %s573 = smul.f32 %s148, %s572
    %s574 = smul.f32 %s565, %s573
    %s575 = ssub.f32 %s156, %s574
    %v576 = vstv %s573
    %v577 = vmul.f32 %v518, %v576
    %v578 = vmul.f32 %v519, %v576
    %v579 = vmul.f32 %v520, %v576
    %v580 = vmul.f32 %v521, %v576
    %v581 = vstv %s575
    %v582 = vadd.f32 %v577, %v581
    %v583 = vadd.f32 %v578, %v581
    %v584 = vadd.f32 %v579, %v581
    %v585 = vadd.f32 %v580, %v581
    %v586 = vsel %vm527, %v523, 0.0
    %v587 = vsel %vm529, %v524, 0.0
    %v588 = vadd.f32 %v586, %v587
    %v589 = vsel %vm527, %v525, 0.0
    %v590 = vadd.f32 %v588, %v589
    %v591 = vsel %vm529, %v526, 0.0
    %v592 = vadd.f32 %v590, %v591
    %593 = vadd.xlane.f32.xlu0 %v592
    %v594 = vpop.xlane.xlu0 %593
    %v595 = vrot.slane %v594, 4
    %v596 = vadd.f32 %v594, %v595
    %v597 = vrot.slane %v596, 2
    %v598 = vadd.f32 %v596, %v597
    %v599 = vrot.slane %v598, 1
    %v600 = vadd.f32 %v598, %v599
    %s601 = vtos %v600
    %v602 = vmul.f32 %v523, %v523
    %v603 = vmul.f32 %v524, %v524
    %v604 = vmul.f32 %v525, %v525
    %v605 = vmul.f32 %v526, %v526
    %v606 = vsel %vm527, %v602, 0.0
    %v607 = vsel %vm529, %v603, 0.0
    %v608 = vadd.f32 %v606, %v607
    %v609 = vsel %vm527, %v604, 0.0
    %v610 = vadd.f32 %v608, %v609
    %v611 = vsel %vm529, %v605, 0.0
    %v612 = vadd.f32 %v610, %v611
    %613 = vadd.xlane.f32.xlu0 %v612
    %v614 = vpop.xlane.xlu0 %613
    %v615 = vrot.slane %v614, 4
    %v616 = vadd.f32 %v614, %v615
    %v617 = vrot.slane %v616, 2
    %v618 = vadd.f32 %v616, %v617
    %v619 = vrot.slane %v618, 1
    %v620 = vadd.f32 %v618, %v619
    %s621 = vtos %v620
    %s622 = smul.f32 %s601, 0.0022222223
    %s623 = smul.f32 %s621, 0.0022222223
    %s624 = smul.f32 %s622, %s622
    %s625 = ssub.f32 %s623, %s624
    %s626 = sadd.f32 %s625, 1e-05
    %v627 = vstv %s626
    %v628 = vrsqrt.pop %v627
    %s629 = vtos %v628
    %s630 = smul.f32 %s149, %s629
    %s631 = smul.f32 %s622, %s630
    %s632 = ssub.f32 %s157, %s631
    %v633 = vstv %s630
    %v634 = vmul.f32 %v523, %v633
    %v635 = vmul.f32 %v524, %v633
    %v636 = vmul.f32 %v525, %v633
    %v637 = vmul.f32 %v526, %v633
    %v638 = vstv %s632
    %v639 = vadd.f32 %v634, %v638
    %v640 = vadd.f32 %v635, %v638
    %v641 = vadd.f32 %v636, %v638
    %v642 = vadd.f32 %v637, %v638
    %v643 = vmax.f32 %v582, 0.0
    %v644 = vmax.f32 %v583, 0.0
    %v645 = vmax.f32 %v584, 0.0
    %v646 = vmax.f32 %v585, 0.0
    %v647 = vmax.f32 %v639, 0.0
    %v648 = vmax.f32 %v640, 0.0
    %v649 = vmax.f32 %v641, 0.0
    %v650 = vmax.f32 %v642, 0.0
    %v651 = vsel %vm527, %v643, 0.0
    %v652 = vsel %vm529, %v644, 0.0
    %v653 = vadd.f32 %v651, %v652
    %v654 = vsel %vm527, %v645, 0.0
    %v655 = vadd.f32 %v653, %v654
    %v656 = vsel %vm529, %v646, 0.0
    %v657 = vadd.f32 %v655, %v656
    %658 = vadd.xlane.f32.xlu0 %v657
    %v659 = vpop.xlane.xlu0 %658
    %v660 = vrot.slane %v659, 4
    %v661 = vadd.f32 %v659, %v660
    %v662 = vrot.slane %v661, 2
    %v663 = vadd.f32 %v661, %v662
    %v664 = vrot.slane %v663, 1
    %v665 = vadd.f32 %v663, %v664
    %s666 = vtos %v665
    %v667 = vmul.f32 %v643, %v643
    %v668 = vmul.f32 %v644, %v644
    %v669 = vmul.f32 %v645, %v645
    %v670 = vmul.f32 %v646, %v646
    %v671 = vsel %vm527, %v667, 0.0
    %v672 = vsel %vm529, %v668, 0.0
    %v673 = vadd.f32 %v671, %v672
    %v674 = vsel %vm527, %v669, 0.0
    %v675 = vadd.f32 %v673, %v674
    %v676 = vsel %vm529, %v670, 0.0
    %v677 = vadd.f32 %v675, %v676
    %678 = vadd.xlane.f32.xlu0 %v677
    %v679 = vpop.xlane.xlu0 %678
    %v680 = vrot.slane %v679, 4
    %v681 = vadd.f32 %v679, %v680
    %v682 = vrot.slane %v681, 2
    %v683 = vadd.f32 %v681, %v682
    %v684 = vrot.slane %v683, 1
    %v685 = vadd.f32 %v683, %v684
    %s686 = vtos %v685
    %s687 = smul.f32 %s666, 0.0022222223
    %s688 = smul.f32 %s686, 0.0022222223
    %s689 = smul.f32 %s687, %s687
    %s690 = ssub.f32 %s688, %s689
    %s691 = sadd.f32 %s690, 1e-05
    %v692 = vstv %s691
    %v693 = vrsqrt.pop %v692
    %s694 = vtos %v693
    %s695 = smul.f32 %s150, %s694
    %s696 = smul.f32 %s687, %s695
    %s697 = ssub.f32 %s158, %s696
    %v698 = vstv %s695
    %v699 = vmul.f32 %v643, %v698
    %v700 = vmul.f32 %v644, %v698
    %v701 = vmul.f32 %v645, %v698
    %v702 = vmul.f32 %v646, %v698
    %v703 = vstv %s697
    %v704 = vadd.f32 %v699, %v703
    %v705 = vadd.f32 %v700, %v703
    %v706 = vadd.f32 %v701, %v703
    %v707 = vadd.f32 %v702, %v703
    %v708 = vsel %vm527, %v647, 0.0
    %v709 = vsel %vm529, %v648, 0.0
    %v710 = vadd.f32 %v708, %v709
    %v711 = vsel %vm527, %v649, 0.0
    %v712 = vadd.f32 %v710, %v711
    %v713 = vsel %vm529, %v650, 0.0
    %v714 = vadd.f32 %v712, %v713
    %715 = vadd.xlane.f32.xlu0 %v714
    %v716 = vpop.xlane.xlu0 %715
    %v717 = vrot.slane %v716, 4
    %v718 = vadd.f32 %v716, %v717
    %v719 = vrot.slane %v718, 2
    %v720 = vadd.f32 %v718, %v719
    %v721 = vrot.slane %v720, 1
    %v722 = vadd.f32 %v720, %v721
    %s723 = vtos %v722
    %v724 = vmul.f32 %v647, %v647
    %v725 = vmul.f32 %v648, %v648
    %v726 = vmul.f32 %v649, %v649
    %v727 = vmul.f32 %v650, %v650
    %v728 = vsel %vm527, %v724, 0.0
    %v729 = vsel %vm529, %v725, 0.0
    %v730 = vadd.f32 %v728, %v729
    %v731 = vsel %vm527, %v726, 0.0
    %v732 = vadd.f32 %v730, %v731
    %v733 = vsel %vm529, %v727, 0.0
    %v734 = vadd.f32 %v732, %v733
    %735 = vadd.xlane.f32.xlu0 %v734
    %v736 = vpop.xlane.xlu0 %735
    %v737 = vrot.slane %v736, 4
    %v738 = vadd.f32 %v736, %v737
    %v739 = vrot.slane %v738, 2
    %v740 = vadd.f32 %v738, %v739
    %v741 = vrot.slane %v740, 1
    %v742 = vadd.f32 %v740, %v741
    %s743 = vtos %v742
    %s744 = smul.f32 %s723, 0.0022222223
    %s745 = smul.f32 %s743, 0.0022222223
    %s746 = smul.f32 %s744, %s744
    %s747 = ssub.f32 %s745, %s746
    %s748 = sadd.f32 %s747, 1e-05
    %v749 = vstv %s748
    %v750 = vrsqrt.pop %v749
    %s751 = vtos %v750
    %s752 = smul.f32 %s151, %s751
    %s753 = smul.f32 %s744, %s752
    %s754 = ssub.f32 %s159, %s753
    %v755 = vstv %s752
    %v756 = vmul.f32 %v647, %v755
    %v757 = vmul.f32 %v648, %v755
    %v758 = vmul.f32 %v649, %v755
    %v759 = vmul.f32 %v650, %v755
    %v760 = vstv %s754
    %v761 = vadd.f32 %v756, %v760
    %v762 = vadd.f32 %v757, %v760
    %v763 = vadd.f32 %v758, %v760
    %v764 = vadd.f32 %v759, %v760
    %v765 = vstv %s128
    %v766 = vmul.f32 %v765, %v704
    %v767 = vmul.f32 %v765, %v705
    %v768 = vmul.f32 %v765, %v706
    %v769 = vmul.f32 %v765, %v707
    %v770 = vstv %s136
    %v771 = vmul.f32 %v770, %v704
    %v772 = vmul.f32 %v770, %v705
    %v773 = vmul.f32 %v770, %v706
    %v774 = vmul.f32 %v770, %v707
    %v775 = vstv %s129
    %v776 = vmul.f32 %v775, %v704
    %v777 = vmul.f32 %v775, %v705
    %v778 = vmul.f32 %v775, %v706
    %v779 = vmul.f32 %v775, %v707
    %784 = vrot.lane.b32.xlu0 %v776, 127
    %v785 = vpop.permute.xlu0 %784
    %786 = vrot.lane.b32.xlu0 %v777, 127
    %v787 = vpop.permute.xlu0 %786
    %788 = vrot.lane.b32.xlu0 %v778, 127
    %v789 = vpop.permute.xlu0 %788
    %790 = vrot.lane.b32.xlu0 %v779, 127
    %v791 = vpop.permute.xlu0 %790
    %v796 = vadd.f32 %v766, %v785
    %v797 = vadd.f32 %v767, %v787
    %v798 = vadd.f32 %v768, %v789
    %v799 = vadd.f32 %v769, %v791
    %v800 = vstv %s137
    %v801 = vmul.f32 %v800, %v704
    %v802 = vmul.f32 %v800, %v705
    %v803 = vmul.f32 %v800, %v706
    %v804 = vmul.f32 %v800, %v707
    %809 = vrot.lane.b32.xlu0 %v801, 127
    %v810 = vpop.permute.xlu0 %809
    %811 = vrot.lane.b32.xlu0 %v802, 127
    %v812 = vpop.permute.xlu0 %811
    %813 = vrot.lane.b32.xlu0 %v803, 127
    %v814 = vpop.permute.xlu0 %813
    %815 = vrot.lane.b32.xlu0 %v804, 127
    %v816 = vpop.permute.xlu0 %815
    %v821 = vadd.f32 %v771, %v810
    %v822 = vadd.f32 %v772, %v812
    %v823 = vadd.f32 %v773, %v814
    %v824 = vadd.f32 %v774, %v816
    %v825 = vstv %s130
    %v826 = vmul.f32 %v825, %v704
    %v827 = vmul.f32 %v825, %v705
    %v828 = vmul.f32 %v825, %v706
    %v829 = vmul.f32 %v825, %v707
    %v834 = vrot.slane %v826, 1
    %v835 = vrot.slane %v827, 1
    %v836 = vsel %vm241, %v834, %v835
    %v837 = vrot.slane %v828, 1
    %v838 = vrot.slane %v829, 1
    %v839 = vsel %vm241, %v837, %v838
    %v844 = vadd.f32 %v796, %v836
    %v845 = vadd.f32 %v797, %v835
    %v846 = vadd.f32 %v798, %v839
    %v847 = vadd.f32 %v799, %v838
    %v848 = vstv %s138
    %v849 = vmul.f32 %v848, %v704
    %v850 = vmul.f32 %v848, %v705
    %v851 = vmul.f32 %v848, %v706
    %v852 = vmul.f32 %v848, %v707
    %v857 = vrot.slane %v849, 1
    %v858 = vrot.slane %v850, 1
    %v859 = vsel %vm241, %v857, %v858
    %v860 = vrot.slane %v851, 1
    %v861 = vrot.slane %v852, 1
    %v862 = vsel %vm241, %v860, %v861
    %v867 = vadd.f32 %v821, %v859
    %v868 = vadd.f32 %v822, %v858
    %v869 = vadd.f32 %v823, %v862
    %v870 = vadd.f32 %v824, %v861
    %v871 = vstv %s131
    %v872 = vmul.f32 %v871, %v704
    %v873 = vmul.f32 %v871, %v705
    %v874 = vmul.f32 %v871, %v706
    %v875 = vmul.f32 %v871, %v707
    %v880 = vrot.slane %v872, 1
    %v881 = vrot.slane %v873, 1
    %v882 = vsel %vm241, %v880, %v881
    %v883 = vrot.slane %v874, 1
    %v884 = vrot.slane %v875, 1
    %v885 = vsel %vm241, %v883, %v884
    %886 = vrot.lane.b32.xlu0 %v882, 127
    %v887 = vpop.permute.xlu0 %886
    %888 = vrot.lane.b32.xlu0 %v881, 127
    %v889 = vpop.permute.xlu0 %888
    %890 = vrot.lane.b32.xlu0 %v885, 127
    %v891 = vpop.permute.xlu0 %890
    %892 = vrot.lane.b32.xlu0 %v884, 127
    %v893 = vpop.permute.xlu0 %892
    %v898 = vadd.f32 %v844, %v887
    %v899 = vadd.f32 %v845, %v889
    %v900 = vadd.f32 %v846, %v891
    %v901 = vadd.f32 %v847, %v893
    %v902 = vstv %s139
    %v903 = vmul.f32 %v902, %v704
    %v904 = vmul.f32 %v902, %v705
    %v905 = vmul.f32 %v902, %v706
    %v906 = vmul.f32 %v902, %v707
    %v911 = vrot.slane %v903, 1
    %v912 = vrot.slane %v904, 1
    %v913 = vsel %vm241, %v911, %v912
    %v914 = vrot.slane %v905, 1
    %v915 = vrot.slane %v906, 1
    %v916 = vsel %vm241, %v914, %v915
    %917 = vrot.lane.b32.xlu0 %v913, 127
    %v918 = vpop.permute.xlu0 %917
    %919 = vrot.lane.b32.xlu0 %v912, 127
    %v920 = vpop.permute.xlu0 %919
    %921 = vrot.lane.b32.xlu0 %v916, 127
    %v922 = vpop.permute.xlu0 %921
    %923 = vrot.lane.b32.xlu0 %v915, 127
    %v924 = vpop.permute.xlu0 %923
    %v929 = vadd.f32 %v867, %v918
    %v930 = vadd.f32 %v868, %v920
    %v931 = vadd.f32 %v869, %v922
    %v932 = vadd.f32 %v870, %v924
    %v933 = vstv %s132
    %v934 = vmul.f32 %v933, %v761
    %v935 = vmul.f32 %v933, %v762
    %v936 = vmul.f32 %v933, %v763
    %v937 = vmul.f32 %v933, %v764
    %v938 = vadd.f32 %v898, %v934
    %v939 = vadd.f32 %v899, %v935
    %v940 = vadd.f32 %v900, %v936
    %v941 = vadd.f32 %v901, %v937
    %v942 = vstv %s140
    %v943 = vmul.f32 %v942, %v761
    %v944 = vmul.f32 %v942, %v762
    %v945 = vmul.f32 %v942, %v763
    %v946 = vmul.f32 %v942, %v764
    %v947 = vadd.f32 %v929, %v943
    %v948 = vadd.f32 %v930, %v944
    %v949 = vadd.f32 %v931, %v945
    %v950 = vadd.f32 %v932, %v946
    %v951 = vstv %s133
    %v952 = vmul.f32 %v951, %v761
    %v953 = vmul.f32 %v951, %v762
    %v954 = vmul.f32 %v951, %v763
    %v955 = vmul.f32 %v951, %v764
    %960 = vrot.lane.b32.xlu0 %v952, 127
    %v961 = vpop.permute.xlu0 %960
    %962 = vrot.lane.b32.xlu0 %v953, 127
    %v963 = vpop.permute.xlu0 %962
    %964 = vrot.lane.b32.xlu0 %v954, 127
    %v965 = vpop.permute.xlu0 %964
    %966 = vrot.lane.b32.xlu0 %v955, 127
    %v967 = vpop.permute.xlu0 %966
    %v972 = vadd.f32 %v938, %v961
    %v973 = vadd.f32 %v939, %v963
    %v974 = vadd.f32 %v940, %v965
    %v975 = vadd.f32 %v941, %v967
    %v976 = vstv %s141
    %v977 = vmul.f32 %v976, %v761
    %v978 = vmul.f32 %v976, %v762
    %v979 = vmul.f32 %v976, %v763
    %v980 = vmul.f32 %v976, %v764
    %985 = vrot.lane.b32.xlu0 %v977, 127
    %v986 = vpop.permute.xlu0 %985
    %987 = vrot.lane.b32.xlu0 %v978, 127
    %v988 = vpop.permute.xlu0 %987
    %989 = vrot.lane.b32.xlu0 %v979, 127
    %v990 = vpop.permute.xlu0 %989
    %991 = vrot.lane.b32.xlu0 %v980, 127
    %v992 = vpop.permute.xlu0 %991
    %v997 = vadd.f32 %v947, %v986
    %v998 = vadd.f32 %v948, %v988
    %v999 = vadd.f32 %v949, %v990
    %v1000 = vadd.f32 %v950, %v992
    %v1001 = vstv %s134
    %v1002 = vmul.f32 %v1001, %v761
    %v1003 = vmul.f32 %v1001, %v762
    %v1004 = vmul.f32 %v1001, %v763
    %v1005 = vmul.f32 %v1001, %v764
    %v1010 = vrot.slane %v1002, 1
    %v1011 = vrot.slane %v1003, 1
    %v1012 = vsel %vm241, %v1010, %v1011
    %v1013 = vrot.slane %v1004, 1
    %v1014 = vrot.slane %v1005, 1
    %v1015 = vsel %vm241, %v1013, %v1014
    %v1020 = vadd.f32 %v972, %v1012
    %v1021 = vadd.f32 %v973, %v1011
    %v1022 = vadd.f32 %v974, %v1015
    %v1023 = vadd.f32 %v975, %v1014
    %v1024 = vstv %s142
    %v1025 = vmul.f32 %v1024, %v761
    %v1026 = vmul.f32 %v1024, %v762
    %v1027 = vmul.f32 %v1024, %v763
    %v1028 = vmul.f32 %v1024, %v764
    %v1033 = vrot.slane %v1025, 1
    %v1034 = vrot.slane %v1026, 1
    %v1035 = vsel %vm241, %v1033, %v1034
    %v1036 = vrot.slane %v1027, 1
    %v1037 = vrot.slane %v1028, 1
    %v1038 = vsel %vm241, %v1036, %v1037
    %v1043 = vadd.f32 %v997, %v1035
    %v1044 = vadd.f32 %v998, %v1034
    %v1045 = vadd.f32 %v999, %v1038
    %v1046 = vadd.f32 %v1000, %v1037
    %v1047 = vstv %s135
    %v1048 = vmul.f32 %v1047, %v761
    %v1049 = vmul.f32 %v1047, %v762
    %v1050 = vmul.f32 %v1047, %v763
    %v1051 = vmul.f32 %v1047, %v764
    %v1056 = vrot.slane %v1048, 1
    %v1057 = vrot.slane %v1049, 1
    %v1058 = vsel %vm241, %v1056, %v1057
    %v1059 = vrot.slane %v1050, 1
    %v1060 = vrot.slane %v1051, 1
    %v1061 = vsel %vm241, %v1059, %v1060
    %1062 = vrot.lane.b32.xlu0 %v1058, 127
    %v1063 = vpop.permute.xlu0 %1062
    %1064 = vrot.lane.b32.xlu0 %v1057, 127
    %v1065 = vpop.permute.xlu0 %1064
    %1066 = vrot.lane.b32.xlu0 %v1061, 127
    %v1067 = vpop.permute.xlu0 %1066
    %1068 = vrot.lane.b32.xlu0 %v1060, 127
    %v1069 = vpop.permute.xlu0 %1068
    %v1074 = vadd.f32 %v1020, %v1063
    %v1075 = vadd.f32 %v1021, %v1065
    %v1076 = vadd.f32 %v1022, %v1067
    %v1077 = vadd.f32 %v1023, %v1069
    %v1078 = vstv %s143
    %v1079 = vmul.f32 %v1078, %v761
    %v1080 = vmul.f32 %v1078, %v762
    %v1081 = vmul.f32 %v1078, %v763
    %v1082 = vmul.f32 %v1078, %v764
    %v1087 = vrot.slane %v1079, 1
    %v1088 = vrot.slane %v1080, 1
    %v1089 = vsel %vm241, %v1087, %v1088
    %v1090 = vrot.slane %v1081, 1
    %v1091 = vrot.slane %v1082, 1
    %v1092 = vsel %vm241, %v1090, %v1091
    %1093 = vrot.lane.b32.xlu0 %v1089, 127
    %v1094 = vpop.permute.xlu0 %1093
    %1095 = vrot.lane.b32.xlu0 %v1088, 127
    %v1096 = vpop.permute.xlu0 %1095
    %1097 = vrot.lane.b32.xlu0 %v1092, 127
    %v1098 = vpop.permute.xlu0 %1097
    %1099 = vrot.lane.b32.xlu0 %v1091, 127
    %v1100 = vpop.permute.xlu0 %1099
    %v1105 = vadd.f32 %v1043, %v1094
    %v1106 = vadd.f32 %v1044, %v1096
    %v1107 = vadd.f32 %v1045, %v1098
    %v1108 = vadd.f32 %v1046, %v1100
    %v1109 = vstv %s146
    %v1110 = vadd.f32 %v1074, %v1109
    %v1111 = vadd.f32 %v1075, %v1109
    %v1112 = vadd.f32 %v1076, %v1109
    %v1113 = vadd.f32 %v1077, %v1109
    %v1114 = vstv %s147
    %v1115 = vadd.f32 %v1105, %v1114
    %v1116 = vadd.f32 %v1106, %v1114
    %v1117 = vadd.f32 %v1107, %v1114
    %v1118 = vadd.f32 %v1108, %v1114
    %vm1119 = vcmask 113664
    %v1120 = vsel %vm1119, %v1110, 0.0
    %vm1121 = vcmask 111616
    %v1122 = vsel %vm1121, %v1111, 0.0
    %v1123 = vadd.f32 %v1120, %v1122
    %v1124 = vsel %vm1119, %v1112, 0.0
    %v1125 = vadd.f32 %v1123, %v1124
    %v1126 = vsel %vm1121, %v1113, 0.0
    %v1127 = vadd.f32 %v1125, %v1126
    %1128 = vadd.xlane.f32.xlu0 %v1127
    %v1129 = vpop.xlane.xlu0 %1128
    %v1130 = vrot.slane %v1129, 4
    %v1131 = vadd.f32 %v1129, %v1130
    %v1132 = vrot.slane %v1131, 2
    %v1133 = vadd.f32 %v1131, %v1132
    %v1134 = vrot.slane %v1133, 1
    %v1135 = vadd.f32 %v1133, %v1134
    %s1136 = vtos %v1135
    %v1137 = vmul.f32 %v1110, %v1110
    %v1138 = vmul.f32 %v1111, %v1111
    %v1139 = vmul.f32 %v1112, %v1112
    %v1140 = vmul.f32 %v1113, %v1113
    %v1141 = vsel %vm1119, %v1137, 0.0
    %v1142 = vsel %vm1121, %v1138, 0.0
    %v1143 = vadd.f32 %v1141, %v1142
    %v1144 = vsel %vm1119, %v1139, 0.0
    %v1145 = vadd.f32 %v1143, %v1144
    %v1146 = vsel %vm1121, %v1140, 0.0
    %v1147 = vadd.f32 %v1145, %v1146
    %1148 = vadd.xlane.f32.xlu0 %v1147
    %v1149 = vpop.xlane.xlu0 %1148
    %v1150 = vrot.slane %v1149, 4
    %v1151 = vadd.f32 %v1149, %v1150
    %v1152 = vrot.slane %v1151, 2
    %v1153 = vadd.f32 %v1151, %v1152
    %v1154 = vrot.slane %v1153, 1
    %v1155 = vadd.f32 %v1153, %v1154
    %s1156 = vtos %v1155
    %s1157 = smul.f32 %s1136, 0.0025510204
    %s1158 = smul.f32 %s1156, 0.0025510204
    %s1159 = smul.f32 %s1157, %s1157
    %s1160 = ssub.f32 %s1158, %s1159
    %s1161 = sadd.f32 %s1160, 1e-05
    %v1162 = vstv %s1161
    %v1163 = vrsqrt.pop %v1162
    %s1164 = vtos %v1163
    %s1165 = smul.f32 %s152, %s1164
    %s1166 = smul.f32 %s1157, %s1165
    %s1167 = ssub.f32 %s160, %s1166
    %v1168 = vstv %s1165
    %v1169 = vmul.f32 %v1110, %v1168
    %v1170 = vmul.f32 %v1111, %v1168
    %v1171 = vmul.f32 %v1112, %v1168
    %v1172 = vmul.f32 %v1113, %v1168
    %v1173 = vstv %s1167
    %v1174 = vadd.f32 %v1169, %v1173
    %v1175 = vadd.f32 %v1170, %v1173
    %v1176 = vadd.f32 %v1171, %v1173
    %v1177 = vadd.f32 %v1172, %v1173
    %v1178 = vsel %vm1119, %v1115, 0.0
    %v1179 = vsel %vm1121, %v1116, 0.0
    %v1180 = vadd.f32 %v1178, %v1179
    %v1181 = vsel %vm1119, %v1117, 0.0
    %v1182 = vadd.f32 %v1180, %v1181
    %v1183 = vsel %vm1121, %v1118, 0.0
    %v1184 = vadd.f32 %v1182, %v1183
    %1185 = vadd.xlane.f32.xlu0 %v1184
    %v1186 = vpop.xlane.xlu0 %1185
    %v1187 = vrot.slane %v1186, 4
    %v1188 = vadd.f32 %v1186, %v1187
    %v1189 = vrot.slane %v1188, 2
    %v1190 = vadd.f32 %v1188, %v1189
    %v1191 = vrot.slane %v1190, 1
    %v1192 = vadd.f32 %v1190, %v1191
    %s1193 = vtos %v1192
    %v1194 = vmul.f32 %v1115, %v1115
    %v1195 = vmul.f32 %v1116, %v1116
    %v1196 = vmul.f32 %v1117, %v1117
    %v1197 = vmul.f32 %v1118, %v1118
    %v1198 = vsel %vm1119, %v1194, 0.0
    %v1199 = vsel %vm1121, %v1195, 0.0
    %v1200 = vadd.f32 %v1198, %v1199
    %v1201 = vsel %vm1119, %v1196, 0.0
    %v1202 = vadd.f32 %v1200, %v1201
    %v1203 = vsel %vm1121, %v1197, 0.0
    %v1204 = vadd.f32 %v1202, %v1203
    %1205 = vadd.xlane.f32.xlu0 %v1204
    %v1206 = vpop.xlane.xlu0 %1205
    %v1207 = vrot.slane %v1206, 4
    %v1208 = vadd.f32 %v1206, %v1207
    %v1209 = vrot.slane %v1208, 2
    %v1210 = vadd.f32 %v1208, %v1209
    %v1211 = vrot.slane %v1210, 1
    %v1212 = vadd.f32 %v1210, %v1211
    %s1213 = vtos %v1212
    %s1214 = smul.f32 %s1193, 0.0025510204
    %s1215 = smul.f32 %s1213, 0.0025510204
    %s1216 = smul.f32 %s1214, %s1214
    %s1217 = ssub.f32 %s1215, %s1216
    %s1218 = sadd.f32 %s1217, 1e-05
    %v1219 = vstv %s1218
    %v1220 = vrsqrt.pop %v1219
    %s1221 = vtos %v1220
    %s1222 = smul.f32 %s153, %s1221
    %s1223 = smul.f32 %s1214, %s1222
    %s1224 = ssub.f32 %s161, %s1223
    %v1225 = vstv %s1222
    %v1226 = vmul.f32 %v1115, %v1225
    %v1227 = vmul.f32 %v1116, %v1225
    %v1228 = vmul.f32 %v1117, %v1225
    %v1229 = vmul.f32 %v1118, %v1225
    %v1230 = vstv %s1224
    %v1231 = vadd.f32 %v1226, %v1230
    %v1232 = vadd.f32 %v1227, %v1230
    %v1233 = vadd.f32 %v1228, %v1230
    %v1234 = vadd.f32 %v1229, %v1230
    %v1235 = vmax.f32 %v1174, 0.0
    %v1236 = vmax.f32 %v1175, 0.0
    %v1237 = vmax.f32 %v1176, 0.0
    %v1238 = vmax.f32 %v1177, 0.0
    %v1239 = vmax.f32 %v1231, 0.0
    %v1240 = vmax.f32 %v1232, 0.0
    %v1241 = vmax.f32 %v1233, 0.0
    %v1242 = vmax.f32 %v1234, 0.0
    %1247 = vrot.lane.b32.xlu0 %v1235, 127
    %v1248 = vpop.permute.xlu0 %1247
    %1249 = vrot.lane.b32.xlu0 %v1236, 127
    %v1250 = vpop.permute.xlu0 %1249
    %1251 = vrot.lane.b32.xlu0 %v1237, 127
    %v1252 = vpop.permute.xlu0 %1251
    %1253 = vrot.lane.b32.xlu0 %v1238, 127
    %v1254 = vpop.permute.xlu0 %1253
    %v1259 = vmax.f32 %v1235, %v1248
    %v1260 = vmax.f32 %v1236, %v1250
    %v1261 = vmax.f32 %v1237, %v1252
    %v1262 = vmax.f32 %v1238, %v1254
    %1267 = vrot.lane.b32.xlu0 %v1259, 127
    %v1268 = vpop.permute.xlu0 %1267
    %1269 = vrot.lane.b32.xlu0 %v1260, 127
    %v1270 = vpop.permute.xlu0 %1269
    %1271 = vrot.lane.b32.xlu0 %v1261, 127
    %v1272 = vpop.permute.xlu0 %1271
    %1273 = vrot.lane.b32.xlu0 %v1262, 127
    %v1274 = vpop.permute.xlu0 %1273
    %1279 = vrot.lane.b32.xlu0 %v1259, 126
    %v1280 = vpop.permute.xlu0 %1279
    %1281 = vrot.lane.b32.xlu0 %v1260, 126
    %v1282 = vpop.permute.xlu0 %1281
    %1283 = vrot.lane.b32.xlu0 %v1261, 126
    %v1284 = vpop.permute.xlu0 %1283
    %1285 = vrot.lane.b32.xlu0 %v1262, 126
    %v1286 = vpop.permute.xlu0 %1285
    %1291 = vrot.lane.b32.xlu0 %v1259, 125
    %v1292 = vpop.permute.xlu0 %1291
    %1293 = vrot.lane.b32.xlu0 %v1260, 125
    %v1294 = vpop.permute.xlu0 %1293
    %1295 = vrot.lane.b32.xlu0 %v1261, 125
    %v1296 = vpop.permute.xlu0 %1295
    %1297 = vrot.lane.b32.xlu0 %v1262, 125
    %v1298 = vpop.permute.xlu0 %1297
    %1303 = vrot.lane.b32.xlu0 %v1259, 124
    %v1304 = vpop.permute.xlu0 %1303
    %1305 = vrot.lane.b32.xlu0 %v1260, 124
    %v1306 = vpop.permute.xlu0 %1305
    %1307 = vrot.lane.b32.xlu0 %v1261, 124
    %v1308 = vpop.permute.xlu0 %1307
    %1309 = vrot.lane.b32.xlu0 %v1262, 124
    %v1310 = vpop.permute.xlu0 %1309
    %1315 = vrot.lane.b32.xlu0 %v1259, 123
    %v1316 = vpop.permute.xlu0 %1315
    %1317 = vrot.lane.b32.xlu0 %v1260, 123
    %v1318 = vpop.permute.xlu0 %1317
    %1319 = vrot.lane.b32.xlu0 %v1261, 123
    %v1320 = vpop.permute.xlu0 %1319
    %1321 = vrot.lane.b32.xlu0 %v1262, 123
    %v1322 = vpop.permute.xlu0 %1321
    %1327 = vrot.lane.b32.xlu0 %v1259, 122
    %v1328 = vpop.permute.xlu0 %1327
    %1329 = vrot.lane.b32.xlu0 %v1260, 122
    %v1330 = vpop.permute.xlu0 %1329
    %1331 = vrot.lane.b32.xlu0 %v1261, 122
    %v1332 = vpop.permute.xlu0 %1331
    %1333 = vrot.lane.b32.xlu0 %v1262, 122
    %v1334 = vpop.permute.xlu0 %1333
    %vm1339 = vcmask 7168
    %v1340 = vsel %vm1339, %v1259, %v1268
    %v1341 = vsel %vm1339, %v1260, %v1270
    %v1342 = vsel %vm1339, %v1261, %v1272
    %v1343 = vsel %vm1339, %v1262, %v1274
    %vm1344 = vcmask 15360
    %v1345 = vsel %vm1344, %v1340, %v1280
    %v1346 = vsel %vm1344, %v1341, %v1282
    %v1347 = vsel %vm1344, %v1342, %v1284
    %v1348 = vsel %vm1344, %v1343, %v1286
    %vm1349 = vcmask 23552
    %v1350 = vsel %vm1349, %v1345, %v1292
    %v1351 = vsel %vm1349, %v1346, %v1294
    %v1352 = vsel %vm1349, %v1347, %v1296
    %v1353 = vsel %vm1349, %v1348, %v1298
    %vm1354 = vcmask 31744
    %v1355 = vsel %vm1354, %v1350, %v1304
    %v1356 = vsel %vm1354, %v1351, %v1306
    %v1357 = vsel %vm1354, %v1352, %v1308
    %v1358 = vsel %vm1354, %v1353, %v1310
    %vm1359 = vcmask 39936
    %v1360 = vsel %vm1359, %v1355, %v1316
    %v1361 = vsel %vm1359, %v1356, %v1318
    %v1362 = vsel %vm1359, %v1357, %v1320
    %v1363 = vsel %vm1359, %v1358, %v1322
    %vm1364 = vcmask 48128
    %v1365 = vsel %vm1364, %v1360, %v1328
    %v1366 = vsel %vm1364, %v1361, %v1330
    %v1367 = vsel %vm1364, %v1362, %v1332
    %v1368 = vsel %vm1364, %v1363, %v1334
    %v1373 = vrot.slane %v1365, 1
    %v1374 = vrot.slane %v1366, 1
    %v1375 = vsel %vm241, %v1373, %v1374
    %v1376 = vrot.slane %v1367, 1
    %v1377 = vrot.slane %v1368, 1
    %v1378 = vsel %vm241, %v1376, %v1377
    %v1383 = vmax.f32 %v1365, %v1375
    %v1384 = vmax.f32 %v1366, %v1374
    %v1385 = vmax.f32 %v1367, %v1378
    %v1386 = vmax.f32 %v1368, %v1377
    %v1389 = vrot.slane %v1383, 1
    %v1390 = vrot.slane %v1385, 1
    %v1393 = vrot.slane %v1383, 2
    %v1394 = vrot.slane %v1385, 2
    %v1397 = vrot.slane %v1383, 3
    %v1398 = vrot.slane %v1385, 3
    %v1403 = vrot.slane %v1384, 4
    %v1404 = vrot.slane %v1386, 4
    %v1407 = vrot.slane %v1384, 5
    %v1408 = vrot.slane %v1386, 5
    %v1411 = vrot.slane %v1384, 6
    %v1412 = vrot.slane %v1386, 6
    %vm1415 = vcmask 1040384
    %v1416 = vsel %vm1415, %v1383, %v1389
    %v1417 = vsel %vm1415, %v1385, %v1390
    %vm1418 = vcmask 1041408
    %v1419 = vsel %vm1418, %v1416, %v1393
    %v1420 = vsel %vm1418, %v1417, %v1394
    %vm1421 = vcmask 1042432
    %v1422 = vsel %vm1421, %v1419, %v1397
    %v1423 = vsel %vm1421, %v1420, %v1398
    %vm1424 = vcmask 1043456
    %v1425 = vsel %vm1424, %v1422, %v1403
    %v1426 = vsel %vm1424, %v1423, %v1404
    %vm1427 = vcmask 1044480
    %v1428 = vsel %vm1427, %v1425, %v1407
    %v1429 = vsel %vm1427, %v1426, %v1408
    %vm1430 = vcmask 1045504
    %v1431 = vsel %vm1430, %v1428, %v1411
    %v1432 = vsel %vm1430, %v1429, %v1412
    %1437 = vrot.lane.b32.xlu0 %v1239, 127
    %v1438 = vpop.permute.xlu0 %1437
    %1439 = vrot.lane.b32.xlu0 %v1240, 127
    %v1440 = vpop.permute.xlu0 %1439
    %1441 = vrot.lane.b32.xlu0 %v1241, 127
    %v1442 = vpop.permute.xlu0 %1441
    %1443 = vrot.lane.b32.xlu0 %v1242, 127
    %v1444 = vpop.permute.xlu0 %1443
    %v1449 = vmax.f32 %v1239, %v1438
    %v1450 = vmax.f32 %v1240, %v1440
    %v1451 = vmax.f32 %v1241, %v1442
    %v1452 = vmax.f32 %v1242, %v1444
    %1457 = vrot.lane.b32.xlu0 %v1449, 127
    %v1458 = vpop.permute.xlu0 %1457
    %1459 = vrot.lane.b32.xlu0 %v1450, 127
    %v1460 = vpop.permute.xlu0 %1459
    %1461 = vrot.lane.b32.xlu0 %v1451, 127
    %v1462 = vpop.permute.xlu0 %1461
    %1463 = vrot.lane.b32.xlu0 %v1452, 127
    %v1464 = vpop.permute.xlu0 %1463
    %1469 = vrot.lane.b32.xlu0 %v1449, 126
    %v1470 = vpop.permute.xlu0 %1469
    %1471 = vrot.lane.b32.xlu0 %v1450, 126
    %v1472 = vpop.permute.xlu0 %1471
    %1473 = vrot.lane.b32.xlu0 %v1451, 126
    %v1474 = vpop.permute.xlu0 %1473
    %1475 = vrot.lane.b32.xlu0 %v1452, 126
    %v1476 = vpop.permute.xlu0 %1475
    %1481 = vrot.lane.b32.xlu0 %v1449, 125
    %v1482 = vpop.permute.xlu0 %1481
    %1483 = vrot.lane.b32.xlu0 %v1450, 125
    %v1484 = vpop.permute.xlu0 %1483
    %1485 = vrot.lane.b32.xlu0 %v1451, 125
    %v1486 = vpop.permute.xlu0 %1485
    %1487 = vrot.lane.b32.xlu0 %v1452, 125
    %v1488 = vpop.permute.xlu0 %1487
    %1493 = vrot.lane.b32.xlu0 %v1449, 124
    %v1494 = vpop.permute.xlu0 %1493
    %1495 = vrot.lane.b32.xlu0 %v1450, 124
    %v1496 = vpop.permute.xlu0 %1495
    %1497 = vrot.lane.b32.xlu0 %v1451, 124
    %v1498 = vpop.permute.xlu0 %1497
    %1499 = vrot.lane.b32.xlu0 %v1452, 124
    %v1500 = vpop.permute.xlu0 %1499
    %1505 = vrot.lane.b32.xlu0 %v1449, 123
    %v1506 = vpop.permute.xlu0 %1505
    %1507 = vrot.lane.b32.xlu0 %v1450, 123
    %v1508 = vpop.permute.xlu0 %1507
    %1509 = vrot.lane.b32.xlu0 %v1451, 123
    %v1510 = vpop.permute.xlu0 %1509
    %1511 = vrot.lane.b32.xlu0 %v1452, 123
    %v1512 = vpop.permute.xlu0 %1511
    %1517 = vrot.lane.b32.xlu0 %v1449, 122
    %v1518 = vpop.permute.xlu0 %1517
    %1519 = vrot.lane.b32.xlu0 %v1450, 122
    %v1520 = vpop.permute.xlu0 %1519
    %1521 = vrot.lane.b32.xlu0 %v1451, 122
    %v1522 = vpop.permute.xlu0 %1521
    %1523 = vrot.lane.b32.xlu0 %v1452, 122
    %v1524 = vpop.permute.xlu0 %1523
    %v1529 = vsel %vm1339, %v1449, %v1458
    %v1530 = vsel %vm1339, %v1450, %v1460
    %v1531 = vsel %vm1339, %v1451, %v1462
    %v1532 = vsel %vm1339, %v1452, %v1464
    %v1533 = vsel %vm1344, %v1529, %v1470
    %v1534 = vsel %vm1344, %v1530, %v1472
    %v1535 = vsel %vm1344, %v1531, %v1474
    %v1536 = vsel %vm1344, %v1532, %v1476
    %v1537 = vsel %vm1349, %v1533, %v1482
    %v1538 = vsel %vm1349, %v1534, %v1484
    %v1539 = vsel %vm1349, %v1535, %v1486
    %v1540 = vsel %vm1349, %v1536, %v1488
    %v1541 = vsel %vm1354, %v1537, %v1494
    %v1542 = vsel %vm1354, %v1538, %v1496
    %v1543 = vsel %vm1354, %v1539, %v1498
    %v1544 = vsel %vm1354, %v1540, %v1500
    %v1545 = vsel %vm1359, %v1541, %v1506
    %v1546 = vsel %vm1359, %v1542, %v1508
    %v1547 = vsel %vm1359, %v1543, %v1510
    %v1548 = vsel %vm1359, %v1544, %v1512
    %v1549 = vsel %vm1364, %v1545, %v1518
    %v1550 = vsel %vm1364, %v1546, %v1520
    %v1551 = vsel %vm1364, %v1547, %v1522
    %v1552 = vsel %vm1364, %v1548, %v1524
    %v1557 = vrot.slane %v1549, 1
    %v1558 = vrot.slane %v1550, 1
    %v1559 = vsel %vm241, %v1557, %v1558
    %v1560 = vrot.slane %v1551, 1
    %v1561 = vrot.slane %v1552, 1
    %v1562 = vsel %vm241, %v1560, %v1561
    %v1567 = vmax.f32 %v1549, %v1559
    %v1568 = vmax.f32 %v1550, %v1558
    %v1569 = vmax.f32 %v1551, %v1562
    %v1570 = vmax.f32 %v1552, %v1561
    %v1573 = vrot.slane %v1567, 1
    %v1574 = vrot.slane %v1569, 1
    %v1577 = vrot.slane %v1567, 2
    %v1578 = vrot.slane %v1569, 2
    %v1581 = vrot.slane %v1567, 3
    %v1582 = vrot.slane %v1569, 3
    %v1587 = vrot.slane %v1568, 4
    %v1588 = vrot.slane %v1570, 4
    %v1591 = vrot.slane %v1568, 5
    %v1592 = vrot.slane %v1570, 5
    %v1595 = vrot.slane %v1568, 6
    %v1596 = vrot.slane %v1570, 6
    %v1599 = vsel %vm1415, %v1567, %v1573
    %v1600 = vsel %vm1415, %v1569, %v1574
    %v1601 = vsel %vm1418, %v1599, %v1577
    %v1602 = vsel %vm1418, %v1600, %v1578
    %v1603 = vsel %vm1421, %v1601, %v1581
    %v1604 = vsel %vm1421, %v1602, %v1582
    %v1605 = vsel %vm1424, %v1603, %v1587
    %v1606 = vsel %vm1424, %v1604, %v1588
    %v1607 = vsel %vm1427, %v1605, %v1591
    %v1608 = vsel %vm1427, %v1606, %v1592
    %v1609 = vsel %vm1430, %v1607, %v1595
    %v1610 = vsel %vm1430, %v1608, %v1596
    %v1611 = vmul.f32 %v765, %v1431
    %v1612 = vmul.f32 %v765, %v1432
    %v1613 = vmul.f32 %v770, %v1431
    %v1614 = vmul.f32 %v770, %v1432
    %v1615 = vmul.f32 %v775, %v1431
    %v1616 = vmul.f32 %v775, %v1432
    %1619 = vrot.lane.b32.xlu0 %v1615, 127
    %v1620 = vpop.permute.xlu0 %1619
    %1621 = vrot.lane.b32.xlu0 %v1616, 127
    %v1622 = vpop.permute.xlu0 %1621
    %v1625 = vadd.f32 %v1611, %v1620
    %v1626 = vadd.f32 %v1612, %v1622
    %v1627 = vmul.f32 %v800, %v1431
    %v1628 = vmul.f32 %v800, %v1432
    %1631 = vrot.lane.b32.xlu0 %v1627, 127
    %v1632 = vpop.permute.xlu0 %1631
    %1633 = vrot.lane.b32.xlu0 %v1628, 127
    %v1634 = vpop.permute.xlu0 %1633
    %v1637 = vadd.f32 %v1613, %v1632
    %v1638 = vadd.f32 %v1614, %v1634
    %v1639 = vmul.f32 %v825, %v1431
    %v1640 = vmul.f32 %v825, %v1432
    %v1643 = vrot.slane %v1639, 1
    %v1644 = vrot.slane %v1640, 1
    %v1647 = vadd.f32 %v1625, %v1643
    %v1648 = vadd.f32 %v1626, %v1644
    %v1649 = vmul.f32 %v848, %v1431
    %v1650 = vmul.f32 %v848, %v1432
    %v1653 = vrot.slane %v1649, 1
    %v1654 = vrot.slane %v1650, 1
    %v1657 = vadd.f32 %v1637, %v1653
    %v1658 = vadd.f32 %v1638, %v1654
    %v1659 = vmul.f32 %v871, %v1431
    %v1660 = vmul.f32 %v871, %v1432
    %v1663 = vrot.slane %v1659, 1
    %v1664 = vrot.slane %v1660, 1
    %1665 = vrot.lane.b32.xlu0 %v1663, 127
    %v1666 = vpop.permute.xlu0 %1665
    %1667 = vrot.lane.b32.xlu0 %v1664, 127
    %v1668 = vpop.permute.xlu0 %1667
    %v1671 = vadd.f32 %v1647, %v1666
    %v1672 = vadd.f32 %v1648, %v1668
    %v1673 = vmul.f32 %v902, %v1431
    %v1674 = vmul.f32 %v902, %v1432
    %v1677 = vrot.slane %v1673, 1
    %v1678 = vrot.slane %v1674, 1
    %1679 = vrot.lane.b32.xlu0 %v1677, 127
    %v1680 = vpop.permute.xlu0 %1679
    %1681 = vrot.lane.b32.xlu0 %v1678, 127
    %v1682 = vpop.permute.xlu0 %1681
    %v1685 = vadd.f32 %v1657, %v1680
    %v1686 = vadd.f32 %v1658, %v1682
    %v1687 = vmul.f32 %v933, %v1609
    %v1688 = vmul.f32 %v933, %v1610
    %v1689 = vadd.f32 %v1671, %v1687
    %v1690 = vadd.f32 %v1672, %v1688
    %v1691 = vmul.f32 %v942, %v1609
    %v1692 = vmul.f32 %v942, %v1610
    %v1693 = vadd.f32 %v1685, %v1691
    %v1694 = vadd.f32 %v1686, %v1692
    %v1695 = vmul.f32 %v951, %v1609
    %v1696 = vmul.f32 %v951, %v1610
    %1699 = vrot.lane.b32.xlu0 %v1695, 127
    %v1700 = vpop.permute.xlu0 %1699
    %1701 = vrot.lane.b32.xlu0 %v1696, 127
    %v1702 = vpop.permute.xlu0 %1701
    %v1705 = vadd.f32 %v1689, %v1700
    %v1706 = vadd.f32 %v1690, %v1702
    %v1707 = vmul.f32 %v976, %v1609
    %v1708 = vmul.f32 %v976, %v1610
    %1711 = vrot.lane.b32.xlu0 %v1707, 127
    %v1712 = vpop.permute.xlu0 %1711
    %1713 = vrot.lane.b32.xlu0 %v1708, 127
    %v1714 = vpop.permute.xlu0 %1713
    %v1717 = vadd.f32 %v1693, %v1712
    %v1718 = vadd.f32 %v1694, %v1714
    %v1719 = vmul.f32 %v1001, %v1609
    %v1720 = vmul.f32 %v1001, %v1610
    %v1723 = vrot.slane %v1719, 1
    %v1724 = vrot.slane %v1720, 1
    %v1727 = vadd.f32 %v1705, %v1723
    %v1728 = vadd.f32 %v1706, %v1724
    %v1729 = vmul.f32 %v1024, %v1609
    %v1730 = vmul.f32 %v1024, %v1610
    %v1733 = vrot.slane %v1729, 1
    %v1734 = vrot.slane %v1730, 1
    %v1737 = vadd.f32 %v1717, %v1733
    %v1738 = vadd.f32 %v1718, %v1734
    %v1739 = vmul.f32 %v1047, %v1609
    %v1740 = vmul.f32 %v1047, %v1610
    %v1743 = vrot.slane %v1739, 1
    %v1744 = vrot.slane %v1740, 1
    %1745 = vrot.lane.b32.xlu0 %v1743, 127
    %v1746 = vpop.permute.xlu0 %1745
    %1747 = vrot.lane.b32.xlu0 %v1744, 127
    %v1748 = vpop.permute.xlu0 %1747
    %v1751 = vadd.f32 %v1727, %v1746
    %v1752 = vadd.f32 %v1728, %v1748
    %v1753 = vmul.f32 %v1078, %v1609
    %v1754 = vmul.f32 %v1078, %v1610
    %v1757 = vrot.slane %v1753, 1
    %v1758 = vrot.slane %v1754, 1
    %1759 = vrot.lane.b32.xlu0 %v1757, 127
    %v1760 = vpop.permute.xlu0 %1759
    %1761 = vrot.lane.b32.xlu0 %v1758, 127
    %v1762 = vpop.permute.xlu0 %1761
    %v1765 = vadd.f32 %v1737, %v1760
    %v1766 = vadd.f32 %v1738, %v1762
    %v1767 = vadd.f32 %v1751, %v1109
    %v1768 = vadd.f32 %v1752, %v1109
    %v1769 = vadd.f32 %v1765, %v1114
    %v1770 = vadd.f32 %v1766, %v1114
    %v1771 = vmax.f32 %v1767, 0.0
    %v1772 = vmax.f32 %v1768, 0.0
    %v1773 = vmax.f32 %v1769, 0.0
    %v1774 = vmax.f32 %v1770, 0.0
    %vm1775 = vcmask 46080
    %v1776 = vsel %vm1775, %v1771, 0.0
    %v1777 = vsel %vm1775, %v1772, 0.0
    %v1778 = vadd.f32 %v1776, %v1777
    %1779 = vadd.xlane.f32.xlu0 %v1778
    %v1780 = vpop.xlane.xlu0 %1779
    %v1781 = vrot.slane %v1780, 4
    %v1782 = vadd.f32 %v1780, %v1781
    %v1783 = vrot.slane %v1782, 2
    %v1784 = vadd.f32 %v1782, %v1783
    %v1785 = vrot.slane %v1784, 1
    %v1786 = vadd.f32 %v1784, %v1785
    %s1787 = vtos %v1786
    %v1788 = vmul.f32 %v1771, %v1771
    %v1789 = vmul.f32 %v1772, %v1772
    %v1790 = vsel %vm1775, %v1788, 0.0
    %v1791 = vsel %vm1775, %v1789, 0.0
    %v1792 = vadd.f32 %v1790, %v1791
    %1793 = vadd.xlane.f32.xlu0 %v1792
    %v1794 = vpop.xlane.xlu0 %1793
    %v1795 = vrot.slane %v1794, 4
    %v1796 = vadd.f32 %v1794, %v1795
    %v1797 = vrot.slane %v1796, 2
    %v1798 = vadd.f32 %v1796, %v1797
    %v1799 = vrot.slane %v1798, 1
    %v1800 = vadd.f32 %v1798, %v1799
    %s1801 = vtos %v1800
    %s1802 = smul.f32 %s1787, 0.013888889
    %s1803 = smul.f32 %s1801, 0.013888889
    %s1804 = smul.f32 %s1802, %s1802
    %s1805 = ssub.f32 %s1803, %s1804
    %s1806 = sadd.f32 %s1805, 1e-05
    %v1807 = vstv %s1806
    %v1808 = vrsqrt.pop %v1807
    %s1809 = vtos %v1808
    %s1810 = smul.f32 %s154, %s1809
    %s1811 = smul.f32 %s1802, %s1810
    %s1812 = ssub.f32 %s162, %s1811
    %v1813 = vstv %s1810
    %v1814 = vmul.f32 %v1771, %v1813
    %v1815 = vmul.f32 %v1772, %v1813
    %v1816 = vstv %s1812
    %v1817 = vadd.f32 %v1814, %v1816
    %v1818 = vadd.f32 %v1815, %v1816
    %v1819 = vsel %vm1775, %v1773, 0.0
    %v1820 = vsel %vm1775, %v1774, 0.0
    %v1821 = vadd.f32 %v1819, %v1820
    %1822 = vadd.xlane.f32.xlu0 %v1821
    %v1823 = vpop.xlane.xlu0 %1822
    %v1824 = vrot.slane %v1823, 4
    %v1825 = vadd.f32 %v1823, %v1824
    %v1826 = vrot.slane %v1825, 2
    %v1827 = vadd.f32 %v1825, %v1826
    %v1828 = vrot.slane %v1827, 1
    %v1829 = vadd.f32 %v1827, %v1828
    %s1830 = vtos %v1829
    %v1831 = vmul.f32 %v1773, %v1773
    %v1832 = vmul.f32 %v1774, %v1774
    %v1833 = vsel %vm1775, %v1831, 0.0
    %v1834 = vsel %vm1775, %v1832, 0.0
    %v1835 = vadd.f32 %v1833, %v1834
    %1836 = vadd.xlane.f32.xlu0 %v1835
    %v1837 = vpop.xlane.xlu0 %1836
    %v1838 = vrot.slane %v1837, 4
    %v1839 = vadd.f32 %v1837, %v1838
    %v1840 = vrot.slane %v1839, 2
    %v1841 = vadd.f32 %v1839, %v1840
    %v1842 = vrot.slane %v1841, 1
    %v1843 = vadd.f32 %v1841, %v1842
    %s1844 = vtos %v1843
    %s1845 = smul.f32 %s1830, 0.013888889
    %s1846 = smul.f32 %s1844, 0.013888889
    %s1847 = smul.f32 %s1845, %s1845
    %s1848 = ssub.f32 %s1846, %s1847
    %s1849 = sadd.f32 %s1848, 1e-05
    %v1850 = vstv %s1849
    %v1851 = vrsqrt.pop %v1850
    %s1852 = vtos %v1851
    %s1853 = smul.f32 %s155, %s1852
    %s1854 = smul.f32 %s1845, %s1853
    %s1855 = ssub.f32 %s163, %s1854
    %v1856 = vstv %s1853
    %v1857 = vmul.f32 %v1773, %v1856
    %v1858 = vmul.f32 %v1774, %v1856
    %v1859 = vstv %s1855
    %v1860 = vadd.f32 %v1857, %v1859
    %v1861 = vadd.f32 %v1858, %v1859
    %1864 = vrot.lane.b32.xlu0 %v1817, 127
    %v1865 = vpop.permute.xlu0 %1864
    %1866 = vrot.lane.b32.xlu0 %v1818, 127
    %v1867 = vpop.permute.xlu0 %1866
    %v1870 = vmax.f32 %v1817, %v1865
    %v1871 = vmax.f32 %v1818, %v1867
    %1874 = vrot.lane.b32.xlu0 %v1870, 127
    %v1875 = vpop.permute.xlu0 %1874
    %1876 = vrot.lane.b32.xlu0 %v1871, 127
    %v1877 = vpop.permute.xlu0 %1876
    %1880 = vrot.lane.b32.xlu0 %v1870, 126
    %v1881 = vpop.permute.xlu0 %1880
    %1882 = vrot.lane.b32.xlu0 %v1871, 126
    %v1883 = vpop.permute.xlu0 %1882
    %v1886 = vsel %vm1339, %v1870, %v1875
    %v1887 = vsel %vm1339, %v1871, %v1877
    %v1888 = vsel %vm1344, %v1886, %v1881
    %v1889 = vsel %vm1344, %v1887, %v1883
    %v1892 = vrot.slane %v1888, 1
    %v1893 = vrot.slane %v1889, 1
    %v1896 = vmax.f32 %v1888, %v1892
    %v1897 = vmax.f32 %v1889, %v1893
    %v1900 = vrot.slane %v1896, 1
    %v1901 = vrot.slane %v1897, 1
    %v1904 = vrot.slane %v1896, 2
    %v1905 = vrot.slane %v1897, 2
    %v1908 = vsel %vm1415, %v1896, %v1900
    %v1909 = vsel %vm1415, %v1897, %v1901
    %v1910 = vsel %vm1418, %v1908, %v1904
    %v1911 = vsel %vm1418, %v1909, %v1905
    %1914 = vrot.lane.b32.xlu0 %v1860, 127
    %v1915 = vpop.permute.xlu0 %1914
    %1916 = vrot.lane.b32.xlu0 %v1861, 127
    %v1917 = vpop.permute.xlu0 %1916
    %v1920 = vmax.f32 %v1860, %v1915
    %v1921 = vmax.f32 %v1861, %v1917
    %1924 = vrot.lane.b32.xlu0 %v1920, 127
    %v1925 = vpop.permute.xlu0 %1924
    %1926 = vrot.lane.b32.xlu0 %v1921, 127
    %v1927 = vpop.permute.xlu0 %1926
    %1930 = vrot.lane.b32.xlu0 %v1920, 126
    %v1931 = vpop.permute.xlu0 %1930
    %1932 = vrot.lane.b32.xlu0 %v1921, 126
    %v1933 = vpop.permute.xlu0 %1932
    %v1936 = vsel %vm1339, %v1920, %v1925
    %v1937 = vsel %vm1339, %v1921, %v1927
    %v1938 = vsel %vm1344, %v1936, %v1931
    %v1939 = vsel %vm1344, %v1937, %v1933
    %v1942 = vrot.slane %v1938, 1
    %v1943 = vrot.slane %v1939, 1
    %v1946 = vmax.f32 %v1938, %v1942
    %v1947 = vmax.f32 %v1939, %v1943
    %v1950 = vrot.slane %v1946, 1
    %v1951 = vrot.slane %v1947, 1
    %v1954 = vrot.slane %v1946, 2
    %v1955 = vrot.slane %v1947, 2
    %v1958 = vsel %vm1415, %v1946, %v1950
    %v1959 = vsel %vm1415, %v1947, %v1951
    %v1960 = vsel %vm1418, %v1958, %v1954
    %v1961 = vsel %vm1418, %v1959, %v1955
    %1964 = vrot.lane.b32.xlu0 %v1910, 127
    %v1965 = vpop.permute.xlu0 %1964
    %1966 = vrot.lane.b32.xlu0 %v1911, 127
    %v1967 = vpop.permute.xlu0 %1966
    %v1970 = vadd.f32 %v1910, %v1965
    %v1971 = vadd.f32 %v1911, %v1967
    %v1974 = vrot.slane %v1970, 1
    %v1975 = vrot.slane %v1971, 1
    %v1978 = vadd.f32 %v1970, %v1974
    %v1979 = vadd.f32 %v1971, %v1975
    %v1980 = vmul.f32 %v1978, 0.25
    %v1981 = vmul.f32 %v1979, 0.25
    %1984 = vrot.lane.b32.xlu0 %v1960, 127
    %v1985 = vpop.permute.xlu0 %1984
    %1986 = vrot.lane.b32.xlu0 %v1961, 127
    %v1987 = vpop.permute.xlu0 %1986
    %v1990 = vadd.f32 %v1960, %v1985
    %v1991 = vadd.f32 %v1961, %v1987
    %v1994 = vrot.slane %v1990, 1
    %v1995 = vrot.slane %v1991, 1
    %v1998 = vadd.f32 %v1990, %v1994
    %v1999 = vadd.f32 %v1991, %v1995
    %v2000 = vmul.f32 %v1998, 0.25
    %v2001 = vmul.f32 %v1999, 0.25
    %v2004 = vrot.slane %v1981, 7
    %vm2005 = vcmask 1041409
    %v2006 = vsel %vm2005, %v2004, %v1980
    %v2010 = vrot.slane %v2001, 7
    %v2011 = vsel %vm2005, %v2010, %v2000
    %2012 = vrot.lane.b32.xlu0 %v2011, 1
    %v2013 = vpop.permute.xlu0 %2012
    %v2015 = vsel %vm1339, %v2006, %v2013
    %vm2016 = vcmask 9216
    %2017 = vst.msk [vmem:[#allocation15] sm:$0x3] %vm2016, %v2015
    // Predicated region
    $region58: #{tpu_custom_call.1} parent=1 // pred_check
      _
    $region59: #{tpu_custom_call.1} parent=1 // pred_check_branch
      %2019 = sbr.rel (0) target = $region61
    $region60: #{tpu_custom_call.1} parent=1 // pred_region
      %s2021 = ssub.s32 32, 32
      %2022 = vsyncadd [#allocation4], %s2021
      %s2024 = sshll.u32 [#allocation15], 4
      %s2025 = int_to_ptr.vmem [resolvable:$true] %s2024
      %2027 = dma.vmem_to_hbm [thread:$0]  %s2025, 32, %s7, [#allocation4]
    $region61: #{tpu_custom_call.1} parent=1 // pred_fallthru
      _
    // Predicated region
    $region62: #{tpu_custom_call.1} parent=1 // pred_check
      _
    $region63: #{tpu_custom_call.1} parent=1 // pred_check_branch
      %2029 = sbr.rel (0) target = $region65
    $region64: #{tpu_custom_call.1} parent=1 // pred_region
      %2030 = dma.done [#allocation4], 32
    $region65: #{tpu_custom_call.1} parent=1 // pred_fallthru
      _
    %2031 = vsyncpa [#allocation3], 1
    %2032 = vsyncpa [#allocation4], 1
    %2033 = vsyncpa [#allocation5], 1
    %2034 = vsyncpa [#allocation8], 1
    %2035 = vsyncpa [#allocation11], 1
    %2036 = vsyncpa [#allocation14], 1

</llo_original>
